<compile_context>
chip_gen: v7x
topology: tpu7x:2x2x1
jax: 0.10.0
libtpu: 0.0.40
codegen_flags: <defaults>
</compile_context>

<pallas_src>
import functools

import jax
import jax.numpy as jnp
from jax.experimental import pallas as pl
from jax.experimental.pallas import tpu as pltpu


# ---------------------------------------------------------------------------
# Fused MHA kernel: one grid step == one batch element, all heads inside.
# ---------------------------------------------------------------------------

def _mha_kernel(x_ref, y_ref, wq_ref, bq_ref, wkv_ref, bkv_ref, wp_ref, bp_ref,
                out_ref, attn_ref, *, num_heads, scale, compute_dtype):
    # x_ref: (1, n, c) compute_dtype        y_ref: (1, m, dr) compute_dtype
    # wq_ref: (c, c)   wkv_ref: (dr, 2c)    wp_ref: (c, c)   (all (in, out))
    # bq/bkv/bp: (1, N) float32
    # out_ref: (1, n, c) f32                attn_ref: (1, h, n, m) f32
    x = x_ref[0]                       # (n, c)
    y = y_ref[0]                       # (m, dr)
    c = wq_ref.shape[1]
    head_dim = c // num_heads

    # projections: MXU matmuls with bf16 operands, f32 accumulation, f32 bias.
    q = jnp.dot(x, wq_ref[...], preferred_element_type=jnp.float32) + bq_ref[...]      # (n, c)
    kv = jnp.dot(y, wkv_ref[...], preferred_element_type=jnp.float32) + bkv_ref[...]   # (m, 2c)

    qc = q.astype(compute_dtype)                 # (n, c)
    keys = kv[:, :c].astype(compute_dtype)       # (m, c)
    values = kv[:, c:].astype(compute_dtype)     # (m, c)

    out_heads = []
    for h in range(num_heads):                   # static unroll over heads
        sl = slice(h * head_dim, (h + 1) * head_dim)
        qh = qc[:, sl]                           # (n, hd)
        kh = keys[:, sl]                         # (m, hd)
        vh = values[:, sl]                       # (m, hd)

        # scores: contract on the head_dim axis of both operands (no transpose).
        s = jax.lax.dot_general(
            qh, kh, (((1,), (1,)), ((), ())),
            preferred_element_type=jnp.float32) * scale          # (n, m) f32

        # numerically-stable softmax, element-wise math in f32.
        s_max = jnp.max(s, axis=-1, keepdims=True)
        p = jnp.exp(s - s_max)
        attn = p * pl.reciprocal(jnp.sum(p, axis=-1, keepdims=True), approx=True)

        attn_ref[0, h] = attn                    # lane-dense (n, m) store
        out_heads.append(
            jnp.dot(attn.astype(compute_dtype), vh,
                    preferred_element_type=jnp.float32))         # (n, hd) f32

    o = jnp.concatenate(out_heads, axis=-1).astype(compute_dtype)   # (n, c)

    # output projection.
    out_ref[0] = (jnp.dot(o, wp_ref[...], preferred_element_type=jnp.float32)
                  + bp_ref[...])


# ---------------------------------------------------------------------------
# Wrapper (layout plumbing only; all compute lives in the fused kernel)
# ---------------------------------------------------------------------------

def multi_head_attention(x, y, params, num_heads, compute_dtype=jnp.bfloat16):
    """Reproduces MultiHeadAttention.forward(x, y, mask=None, alpha=None).

    Returns (out, attention) with out: (b, n, c), attention: (b, n, m, h).
    Dropout p=0.0 -> identity.
    """
    y = x if y is None else y
    b, n, c = x.shape
    _, m, dr = y.shape
    head_dim = c // num_heads
    scale = head_dim ** (-0.5)

    # One-time layout plumbing: weights transposed to (in, out) and cast to the
    # MXU compute dtype; biases kept f32 (added after f32 accumulation).
    wq_t = params["wq"].T.astype(compute_dtype)       # (c, c)
    wkv_t = params["wkv"].T.astype(compute_dtype)     # (dr, 2c)
    wp_t = params["wp"].T.astype(compute_dtype)       # (c, c)
    bq = params["bq"].reshape(1, c).astype(jnp.float32)
    bkv = params["bkv"].reshape(1, 2 * c).astype(jnp.float32)
    bp = params["bp"].reshape(1, c).astype(jnp.float32)
    xc = x.astype(compute_dtype)
    yc = y.astype(compute_dtype)

    out, attn_bhnm = pl.pallas_call(
        functools.partial(_mha_kernel, num_heads=num_heads, scale=scale,
                          compute_dtype=compute_dtype),
        out_shape=(
            jax.ShapeDtypeStruct((b, n, c), jnp.float32),
            jax.ShapeDtypeStruct((b, num_heads, n, m), jnp.float32),
        ),
        grid=(b,),
        in_specs=[
            pl.BlockSpec((1, n, c), lambda i: (i, 0, 0)),
            pl.BlockSpec((1, m, dr), lambda i: (i, 0, 0)),
            pl.BlockSpec((c, c), lambda i: (0, 0)),
            pl.BlockSpec((1, c), lambda i: (0, 0)),
            pl.BlockSpec((dr, 2 * c), lambda i: (0, 0)),
            pl.BlockSpec((1, 2 * c), lambda i: (0, 0)),
            pl.BlockSpec((c, c), lambda i: (0, 0)),
            pl.BlockSpec((1, c), lambda i: (0, 0)),
        ],
        out_specs=(
            pl.BlockSpec((1, n, c), lambda i: (i, 0, 0)),
            pl.BlockSpec((1, num_heads, n, m), lambda i: (i, 0, 0, 0)),
        ),
        compiler_params=pltpu.CompilerParams(
            dimension_semantics=("parallel",)),
    )(xc, yc, wq_t, bq, wkv_t, bkv, wp_t, bp)

    # Kernel stores the attention map lane-dense as (b, h, n, m); transpose to
    # the PyTorch convention (b, n, m, h) once, outside the kernel.
    attention = jnp.transpose(attn_bhnm, (0, 2, 3, 1))
    return out, attention


# ---------------------------------------------------------------------------
# Pure-JAX f32 reference (for verification)
# ---------------------------------------------------------------------------

def reference_mha(x, y, params, num_heads):
    y = x if y is None else y
    b, n, c = x.shape
    _, m, _ = y.shape
    head_dim = c // num_heads
    scale = head_dim ** (-0.5)

    q = (x @ params["wq"].T + params["bq"]).reshape(b, n, num_heads, head_dim)
    kv = (y @ params["wkv"].T + params["bkv"]).reshape(b, m, 2, num_heads, head_dim)
    keys, values = kv[:, :, 0], kv[:, :, 1]
    attn = jnp.einsum("bnhd,bmhd->bnmh", q, keys) * scale
    attn = jax.nn.softmax(attn, axis=2)
    out = jnp.einsum("bnmh,bmhd->bnhd", attn, values).reshape(b, n, c)
    out = out @ params["wp"].T + params["bp"]
    return out, attn


# ---------------------------------------------------------------------------
# Main
# ---------------------------------------------------------------------------

if __name__ == "__main__":
    # Small shapes consistent with the module: dim_self = dim_ref = 32, 4 heads,
    # batch = 2, seq = 8 (self-attention: y = x).
    b, n, dim_self, dim_ref, num_heads = 2, 8, 32, 32, 4

    key = jax.random.PRNGKey(0)
    k_x, k_wq, k_bq, k_wkv, k_bkv, k_wp, k_bp = jax.random.split(key, 7)

    x = jax.random.normal(k_x, (b, n, dim_self), dtype=jnp.float32)

    # Deterministic parameter init (shapes follow nn.Linear: weight (out, in))
    params = {
        "wq": 0.1 * jax.random.normal(k_wq, (dim_self, dim_self), jnp.float32),
        "bq": 0.1 * jax.random.normal(k_bq, (dim_self,), jnp.float32),
        "wkv": 0.1 * jax.random.normal(k_wkv, (dim_self * 2, dim_ref), jnp.float32),
        "bkv": 0.1 * jax.random.normal(k_bkv, (dim_self * 2,), jnp.float32),
        "wp": 0.1 * jax.random.normal(k_wp, (dim_self, dim_self), jnp.float32),
        "bp": 0.1 * jax.random.normal(k_bp, (dim_self,), jnp.float32),
    }

    out, attention = multi_head_attention(x, None, params, num_heads)
    out = jax.block_until_ready(out)
    attention = jax.block_until_ready(attention)

    # Verify against the pure-JAX f32 reference.  Tolerances account for bf16
    # MXU operands + approximate reciprocal (accumulation is f32 throughout).
    out_ref, attn_ref = reference_mha(x, None, params, num_heads)
    assert out.shape == (b, n, dim_self)
    assert attention.shape == (b, n, n, num_heads)
    assert jnp.allclose(out, out_ref, atol=3e-2, rtol=3e-2), (
        float(jnp.max(jnp.abs(out - out_ref))))
    assert jnp.allclose(attention, attn_ref, atol=2e-2, rtol=2e-2), (
        float(jnp.max(jnp.abs(attention - attn_ref))))

    print("KERNEL_OK")
</pallas_src>

<mosaic_0001>
module attributes {stable_mosaic.version = 11 : i64} {
  func.func @_mha_kernel(%arg0: i32, %arg1: memref<1x8x32xbf16, #tpu.memory_space<vmem>>, %arg2: memref<1x8x32xbf16, #tpu.memory_space<vmem>>, %arg3: memref<32x32xbf16, #tpu.memory_space<vmem>>, %arg4: memref<1x32xf32, #tpu.memory_space<vmem>>, %arg5: memref<32x64xbf16, #tpu.memory_space<vmem>>, %arg6: memref<1x64xf32, #tpu.memory_space<vmem>>, %arg7: memref<32x32xbf16, #tpu.memory_space<vmem>>, %arg8: memref<1x32xf32, #tpu.memory_space<vmem>>, %arg9: memref<1x8x32xf32, #tpu.memory_space<vmem>>, %arg10: memref<1x4x8x8xf32, #tpu.memory_space<vmem>>) attributes {dimension_semantics = [#tpu.dimension_semantics<parallel>], iteration_bounds = array<i64: 2>, scalar_prefetch = 0 : i64, scratch_operands = 0 : i64, tpu.core_type = #tpu.core_type<tc>, window_params = [{transform_indices = @transform_0, window_bounds = array<i64: 1, 8, 32>}, {transform_indices = @transform_1, window_bounds = array<i64: 1, 8, 32>}, {pipeline_mode = #tpu.pipeline_mode<synchronous>, transform_indices = @transform_2, window_bounds = array<i64: 32, 32>}, {pipeline_mode = #tpu.pipeline_mode<synchronous>, transform_indices = @transform_3, window_bounds = array<i64: 1, 32>}, {pipeline_mode = #tpu.pipeline_mode<synchronous>, transform_indices = @transform_4, window_bounds = array<i64: 32, 64>}, {pipeline_mode = #tpu.pipeline_mode<synchronous>, transform_indices = @transform_5, window_bounds = array<i64: 1, 64>}, {pipeline_mode = #tpu.pipeline_mode<synchronous>, transform_indices = @transform_6, window_bounds = array<i64: 32, 32>}, {pipeline_mode = #tpu.pipeline_mode<synchronous>, transform_indices = @transform_7, window_bounds = array<i64: 1, 32>}, {transform_indices = @transform_8, window_bounds = array<i64: 1, 8, 32>}, {transform_indices = @transform_9, window_bounds = array<i64: 1, 4, 8, 8>}]} {
    %c0 = arith.constant 0 : index
    %c0_0 = arith.constant 0 : index
    %c0_1 = arith.constant 0 : index
    %0 = vector.load %arg1[%c0, %c0_0, %c0_1] : memref<1x8x32xbf16, #tpu.memory_space<vmem>>, vector<1x8x32xbf16>
    %1 = vector.shape_cast %0 : vector<1x8x32xbf16> to vector<8x32xbf16>
    %c0_2 = arith.constant 0 : index
    %c0_3 = arith.constant 0 : index
    %c0_4 = arith.constant 0 : index
    %2 = vector.load %arg2[%c0_2, %c0_3, %c0_4] : memref<1x8x32xbf16, #tpu.memory_space<vmem>>, vector<1x8x32xbf16>
    %3 = vector.shape_cast %2 : vector<1x8x32xbf16> to vector<8x32xbf16>
    %c0_5 = arith.constant 0 : index
    %c0_6 = arith.constant 0 : index
    %4 = vector.load %arg3[%c0_5, %c0_6] : memref<32x32xbf16, #tpu.memory_space<vmem>>, vector<32x32xbf16>
    %cst = arith.constant dense<0.000000e+00> : vector<8x32xf32>
    %5 = tpu.matmul %1, %4, %cst {dimension_numbers = #tpu.dot_dimension_numbers<[1], [0], [0], [1], [0, 0, 1, 1], [], []>} : vector<8x32xbf16>, vector<32x32xbf16>, vector<8x32xf32> -> vector<8x32xf32>
    %c0_7 = arith.constant 0 : index
    %c0_8 = arith.constant 0 : index
    %6 = vector.load %arg4[%c0_7, %c0_8] : memref<1x32xf32, #tpu.memory_space<vmem>>, vector<1x32xf32>
    %7 = vector.broadcast %6 : vector<1x32xf32> to vector<8x32xf32>
    %8 = arith.addf %5, %7 : vector<8x32xf32>
    %c0_9 = arith.constant 0 : index
    %c0_10 = arith.constant 0 : index
    %9 = vector.load %arg5[%c0_9, %c0_10] : memref<32x64xbf16, #tpu.memory_space<vmem>>, vector<32x64xbf16>
    %cst_11 = arith.constant dense<0.000000e+00> : vector<8x64xf32>
    %10 = tpu.matmul %3, %9, %cst_11 {dimension_numbers = #tpu.dot_dimension_numbers<[1], [0], [0], [1], [0, 0, 1, 1], [], []>} : vector<8x32xbf16>, vector<32x64xbf16>, vector<8x64xf32> -> vector<8x64xf32>
    %c0_12 = arith.constant 0 : index
    %c0_13 = arith.constant 0 : index
    %11 = vector.load %arg6[%c0_12, %c0_13] : memref<1x64xf32, #tpu.memory_space<vmem>>, vector<1x64xf32>
    %12 = vector.broadcast %11 : vector<1x64xf32> to vector<8x64xf32>
    %13 = arith.addf %10, %12 : vector<8x64xf32>
    %14 = arith.truncf %8 : vector<8x32xf32> to vector<8x32xbf16>
    %15 = vector.extract_strided_slice %13 {offsets = [0, 0], sizes = [8, 32], strides = [1, 1]} : vector<8x64xf32> to vector<8x32xf32>
    %16 = arith.truncf %15 : vector<8x32xf32> to vector<8x32xbf16>
    %17 = vector.extract_strided_slice %13 {offsets = [0, 32], sizes = [8, 32], strides = [1, 1]} : vector<8x64xf32> to vector<8x32xf32>
    %18 = arith.truncf %17 : vector<8x32xf32> to vector<8x32xbf16>
    %19 = vector.extract_strided_slice %14 {offsets = [0, 0], sizes = [8, 8], strides = [1, 1]} : vector<8x32xbf16> to vector<8x8xbf16>
    %20 = vector.extract_strided_slice %16 {offsets = [0, 0], sizes = [8, 8], strides = [1, 1]} : vector<8x32xbf16> to vector<8x8xbf16>
    %21 = vector.extract_strided_slice %18 {offsets = [0, 0], sizes = [8, 8], strides = [1, 1]} : vector<8x32xbf16> to vector<8x8xbf16>
    %cst_14 = arith.constant dense<0.000000e+00> : vector<8x8xf32>
    %22 = tpu.matmul %19, %20, %cst_14 {dimension_numbers = #tpu.dot_dimension_numbers<[1], [1], [0], [0], [0, 0, 1, 0], [], []>} : vector<8x8xbf16>, vector<8x8xbf16>, vector<8x8xf32> -> vector<8x8xf32>
    %cst_15 = arith.constant 0.353553385 : f32
    %23 = vector.broadcast %cst_15 : f32 to vector<8x8xf32>
    %24 = arith.mulf %22, %23 : vector<8x8xf32>
    %cst_16 = arith.constant dense<0xFF800000> : vector<8xf32>
    %25 = vector.multi_reduction <maximumf>, %24, %cst_16 [1] : vector<8x8xf32> to vector<8xf32>
    %26 = vector.shape_cast %25 : vector<8xf32> to vector<8x1xf32>
    %27 = vector.broadcast %26 : vector<8x1xf32> to vector<8x8xf32>
    %28 = arith.subf %24, %27 : vector<8x8xf32>
    %29 = math.exp %28 : vector<8x8xf32>
    %cst_17 = arith.constant dense<0.000000e+00> : vector<8xf32>
    %30 = vector.multi_reduction <add>, %29, %cst_17 [1] : vector<8x8xf32> to vector<8xf32>
    %31 = vector.shape_cast %30 : vector<8xf32> to vector<8x1xf32>
    %32 = tpu.reciprocal %31 {approx = true} : vector<8x1xf32> -> vector<8x1xf32>
    %33 = vector.broadcast %32 : vector<8x1xf32> to vector<8x8xf32>
    %34 = arith.mulf %29, %33 : vector<8x8xf32>
    %c0_18 = arith.constant 0 : index
    %c0_19 = arith.constant 0 : index
    %c0_20 = arith.constant 0 : index
    %c0_21 = arith.constant 0 : index
    %35 = vector.load %arg10[%c0_18, %c0_19, %c0_20, %c0_21] : memref<1x4x8x8xf32, #tpu.memory_space<vmem>>, vector<1x1x8x8xf32>
    %36 = vector.shape_cast %35 : vector<1x1x8x8xf32> to vector<8x8xf32>
    %37 = vector.shape_cast %34 : vector<8x8xf32> to vector<1x1x8x8xf32>
    tpu.vector_store %arg10[%c0_18, %c0_19, %c0_20, %c0_21], %37 {strides = array<i32>} : memref<1x4x8x8xf32, #tpu.memory_space<vmem>>, vector<1x1x8x8xf32>,
    %38 = arith.truncf %34 : vector<8x8xf32> to vector<8x8xbf16>
    %cst_22 = arith.constant dense<0.000000e+00> : vector<8x8xf32>
    %39 = tpu.matmul %38, %21, %cst_22 {dimension_numbers = #tpu.dot_dimension_numbers<[1], [0], [0], [1], [0, 0, 1, 1], [], []>} : vector<8x8xbf16>, vector<8x8xbf16>, vector<8x8xf32> -> vector<8x8xf32>
    %40 = vector.extract_strided_slice %14 {offsets = [0, 8], sizes = [8, 8], strides = [1, 1]} : vector<8x32xbf16> to vector<8x8xbf16>
    %41 = vector.extract_strided_slice %16 {offsets = [0, 8], sizes = [8, 8], strides = [1, 1]} : vector<8x32xbf16> to vector<8x8xbf16>
    %42 = vector.extract_strided_slice %18 {offsets = [0, 8], sizes = [8, 8], strides = [1, 1]} : vector<8x32xbf16> to vector<8x8xbf16>
    %cst_23 = arith.constant dense<0.000000e+00> : vector<8x8xf32>
    %43 = tpu.matmul %40, %41, %cst_23 {dimension_numbers = #tpu.dot_dimension_numbers<[1], [1], [0], [0], [0, 0, 1, 0], [], []>} : vector<8x8xbf16>, vector<8x8xbf16>, vector<8x8xf32> -> vector<8x8xf32>
    %cst_24 = arith.constant 0.353553385 : f32
    %44 = vector.broadcast %cst_24 : f32 to vector<8x8xf32>
    %45 = arith.mulf %43, %44 : vector<8x8xf32>
    %cst_25 = arith.constant dense<0xFF800000> : vector<8xf32>
    %46 = vector.multi_reduction <maximumf>, %45, %cst_25 [1] : vector<8x8xf32> to vector<8xf32>
    %47 = vector.shape_cast %46 : vector<8xf32> to vector<8x1xf32>
    %48 = vector.broadcast %47 : vector<8x1xf32> to vector<8x8xf32>
    %49 = arith.subf %45, %48 : vector<8x8xf32>
    %50 = math.exp %49 : vector<8x8xf32>
    %cst_26 = arith.constant dense<0.000000e+00> : vector<8xf32>
    %51 = vector.multi_reduction <add>, %50, %cst_26 [1] : vector<8x8xf32> to vector<8xf32>
    %52 = vector.shape_cast %51 : vector<8xf32> to vector<8x1xf32>
    %53 = tpu.reciprocal %52 {approx = true} : vector<8x1xf32> -> vector<8x1xf32>
    %54 = vector.broadcast %53 : vector<8x1xf32> to vector<8x8xf32>
    %55 = arith.mulf %50, %54 : vector<8x8xf32>
    %c0_27 = arith.constant 0 : index
    %c1 = arith.constant 1 : index
    %c0_28 = arith.constant 0 : index
    %c0_29 = arith.constant 0 : index
    %56 = vector.load %arg10[%c0_27, %c1, %c0_28, %c0_29] : memref<1x4x8x8xf32, #tpu.memory_space<vmem>>, vector<1x1x8x8xf32>
    %57 = vector.shape_cast %56 : vector<1x1x8x8xf32> to vector<8x8xf32>
    %58 = vector.shape_cast %55 : vector<8x8xf32> to vector<1x1x8x8xf32>
    tpu.vector_store %arg10[%c0_27, %c1, %c0_28, %c0_29], %58 {strides = array<i32>} : memref<1x4x8x8xf32, #tpu.memory_space<vmem>>, vector<1x1x8x8xf32>,
    %59 = arith.truncf %55 : vector<8x8xf32> to vector<8x8xbf16>
    %cst_30 = arith.constant dense<0.000000e+00> : vector<8x8xf32>
    %60 = tpu.matmul %59, %42, %cst_30 {dimension_numbers = #tpu.dot_dimension_numbers<[1], [0], [0], [1], [0, 0, 1, 1], [], []>} : vector<8x8xbf16>, vector<8x8xbf16>, vector<8x8xf32> -> vector<8x8xf32>
    %61 = vector.extract_strided_slice %14 {offsets = [0, 16], sizes = [8, 8], strides = [1, 1]} : vector<8x32xbf16> to vector<8x8xbf16>
    %62 = vector.extract_strided_slice %16 {offsets = [0, 16], sizes = [8, 8], strides = [1, 1]} : vector<8x32xbf16> to vector<8x8xbf16>
    %63 = vector.extract_strided_slice %18 {offsets = [0, 16], sizes = [8, 8], strides = [1, 1]} : vector<8x32xbf16> to vector<8x8xbf16>
    %cst_31 = arith.constant dense<0.000000e+00> : vector<8x8xf32>
    %64 = tpu.matmul %61, %62, %cst_31 {dimension_numbers = #tpu.dot_dimension_numbers<[1], [1], [0], [0], [0, 0, 1, 0], [], []>} : vector<8x8xbf16>, vector<8x8xbf16>, vector<8x8xf32> -> vector<8x8xf32>
    %cst_32 = arith.constant 0.353553385 : f32
    %65 = vector.broadcast %cst_32 : f32 to vector<8x8xf32>
    %66 = arith.mulf %64, %65 : vector<8x8xf32>
    %cst_33 = arith.constant dense<0xFF800000> : vector<8xf32>
    %67 = vector.multi_reduction <maximumf>, %66, %cst_33 [1] : vector<8x8xf32> to vector<8xf32>
    %68 = vector.shape_cast %67 : vector<8xf32> to vector<8x1xf32>
    %69 = vector.broadcast %68 : vector<8x1xf32> to vector<8x8xf32>
    %70 = arith.subf %66, %69 : vector<8x8xf32>
    %71 = math.exp %70 : vector<8x8xf32>
    %cst_34 = arith.constant dense<0.000000e+00> : vector<8xf32>
    %72 = vector.multi_reduction <add>, %71, %cst_34 [1] : vector<8x8xf32> to vector<8xf32>
    %73 = vector.shape_cast %72 : vector<8xf32> to vector<8x1xf32>
    %74 = tpu.reciprocal %73 {approx = true} : vector<8x1xf32> -> vector<8x1xf32>
    %75 = vector.broadcast %74 : vector<8x1xf32> to vector<8x8xf32>
    %76 = arith.mulf %71, %75 : vector<8x8xf32>
    %c0_35 = arith.constant 0 : index
    %c2 = arith.constant 2 : index
    %c0_36 = arith.constant 0 : index
    %c0_37 = arith.constant 0 : index
    %77 = vector.load %arg10[%c0_35, %c2, %c0_36, %c0_37] : memref<1x4x8x8xf32, #tpu.memory_space<vmem>>, vector<1x1x8x8xf32>
    %78 = vector.shape_cast %77 : vector<1x1x8x8xf32> to vector<8x8xf32>
    %79 = vector.shape_cast %76 : vector<8x8xf32> to vector<1x1x8x8xf32>
    tpu.vector_store %arg10[%c0_35, %c2, %c0_36, %c0_37], %79 {strides = array<i32>} : memref<1x4x8x8xf32, #tpu.memory_space<vmem>>, vector<1x1x8x8xf32>,
    %80 = arith.truncf %76 : vector<8x8xf32> to vector<8x8xbf16>
    %cst_38 = arith.constant dense<0.000000e+00> : vector<8x8xf32>
    %81 = tpu.matmul %80, %63, %cst_38 {dimension_numbers = #tpu.dot_dimension_numbers<[1], [0], [0], [1], [0, 0, 1, 1], [], []>} : vector<8x8xbf16>, vector<8x8xbf16>, vector<8x8xf32> -> vector<8x8xf32>
    %82 = vector.extract_strided_slice %14 {offsets = [0, 24], sizes = [8, 8], strides = [1, 1]} : vector<8x32xbf16> to vector<8x8xbf16>
    %83 = vector.extract_strided_slice %16 {offsets = [0, 24], sizes = [8, 8], strides = [1, 1]} : vector<8x32xbf16> to vector<8x8xbf16>
    %84 = vector.extract_strided_slice %18 {offsets = [0, 24], sizes = [8, 8], strides = [1, 1]} : vector<8x32xbf16> to vector<8x8xbf16>
    %cst_39 = arith.constant dense<0.000000e+00> : vector<8x8xf32>
    %85 = tpu.matmul %82, %83, %cst_39 {dimension_numbers = #tpu.dot_dimension_numbers<[1], [1], [0], [0], [0, 0, 1, 0], [], []>} : vector<8x8xbf16>, vector<8x8xbf16>, vector<8x8xf32> -> vector<8x8xf32>
    %cst_40 = arith.constant 0.353553385 : f32
    %86 = vector.broadcast %cst_40 : f32 to vector<8x8xf32>
    %87 = arith.mulf %85, %86 : vector<8x8xf32>
    %cst_41 = arith.constant dense<0xFF800000> : vector<8xf32>
    %88 = vector.multi_reduction <maximumf>, %87, %cst_41 [1] : vector<8x8xf32> to vector<8xf32>
    %89 = vector.shape_cast %88 : vector<8xf32> to vector<8x1xf32>
    %90 = vector.broadcast %89 : vector<8x1xf32> to vector<8x8xf32>
    %91 = arith.subf %87, %90 : vector<8x8xf32>
    %92 = math.exp %91 : vector<8x8xf32>
    %cst_42 = arith.constant dense<0.000000e+00> : vector<8xf32>
    %93 = vector.multi_reduction <add>, %92, %cst_42 [1] : vector<8x8xf32> to vector<8xf32>
    %94 = vector.shape_cast %93 : vector<8xf32> to vector<8x1xf32>
    %95 = tpu.reciprocal %94 {approx = true} : vector<8x1xf32> -> vector<8x1xf32>
    %96 = vector.broadcast %95 : vector<8x1xf32> to vector<8x8xf32>
    %97 = arith.mulf %92, %96 : vector<8x8xf32>
    %c0_43 = arith.constant 0 : index
    %c3 = arith.constant 3 : index
    %c0_44 = arith.constant 0 : index
    %c0_45 = arith.constant 0 : index
    %98 = vector.load %arg10[%c0_43, %c3, %c0_44, %c0_45] : memref<1x4x8x8xf32, #tpu.memory_space<vmem>>, vector<1x1x8x8xf32>
    %99 = vector.shape_cast %98 : vector<1x1x8x8xf32> to vector<8x8xf32>
    %100 = vector.shape_cast %97 : vector<8x8xf32> to vector<1x1x8x8xf32>
    tpu.vector_store %arg10[%c0_43, %c3, %c0_44, %c0_45], %100 {strides = array<i32>} : memref<1x4x8x8xf32, #tpu.memory_space<vmem>>, vector<1x1x8x8xf32>,
    %101 = arith.truncf %97 : vector<8x8xf32> to vector<8x8xbf16>
    %cst_46 = arith.constant dense<0.000000e+00> : vector<8x8xf32>
    %102 = tpu.matmul %101, %84, %cst_46 {dimension_numbers = #tpu.dot_dimension_numbers<[1], [0], [0], [1], [0, 0, 1, 1], [], []>} : vector<8x8xbf16>, vector<8x8xbf16>, vector<8x8xf32> -> vector<8x8xf32>
    %103 = tpu.concatenate %39, %60, %81, %102 in 1 : vector<8x8xf32>, vector<8x8xf32>, vector<8x8xf32>, vector<8x8xf32> -> vector<8x32xf32>
    %104 = arith.truncf %103 : vector<8x32xf32> to vector<8x32xbf16>
    %c0_47 = arith.constant 0 : index
    %c0_48 = arith.constant 0 : index
    %105 = vector.load %arg7[%c0_47, %c0_48] : memref<32x32xbf16, #tpu.memory_space<vmem>>, vector<32x32xbf16>
    %cst_49 = arith.constant dense<0.000000e+00> : vector<8x32xf32>
    %106 = tpu.matmul %104, %105, %cst_49 {dimension_numbers = #tpu.dot_dimension_numbers<[1], [0], [0], [1], [0, 0, 1, 1], [], []>} : vector<8x32xbf16>, vector<32x32xbf16>, vector<8x32xf32> -> vector<8x32xf32>
    %c0_50 = arith.constant 0 : index
    %c0_51 = arith.constant 0 : index
    %107 = vector.load %arg8[%c0_50, %c0_51] : memref<1x32xf32, #tpu.memory_space<vmem>>, vector<1x32xf32>
    %108 = vector.broadcast %107 : vector<1x32xf32> to vector<8x32xf32>
    %109 = arith.addf %106, %108 : vector<8x32xf32>
    %c0_52 = arith.constant 0 : index
    %c0_53 = arith.constant 0 : index
    %c0_54 = arith.constant 0 : index
    %110 = vector.load %arg9[%c0_52, %c0_53, %c0_54] : memref<1x8x32xf32, #tpu.memory_space<vmem>>, vector<1x8x32xf32>
    %111 = vector.shape_cast %110 : vector<1x8x32xf32> to vector<8x32xf32>
    %112 = vector.shape_cast %109 : vector<8x32xf32> to vector<1x8x32xf32>
    tpu.vector_store %arg9[%c0_52, %c0_53, %c0_54], %112 {strides = array<i32>} : memref<1x8x32xf32, #tpu.memory_space<vmem>>, vector<1x8x32xf32>,
    return
  }
  func.func @transform_0(%arg0: i32) -> (i32, i32, i32) {
    %c0_i32 = arith.constant 0 : i32
    %c0_i32_0 = arith.constant 0 : i32
    %c0_i32_1 = arith.constant 0 : i32
    return %arg0, %c0_i32, %c0_i32_0 : i32, i32, i32
  }
  func.func @transform_1(%arg0: i32) -> (i32, i32, i32) {
    %c0_i32 = arith.constant 0 : i32
    %c0_i32_0 = arith.constant 0 : i32
    %c0_i32_1 = arith.constant 0 : i32
    return %arg0, %c0_i32, %c0_i32_0 : i32, i32, i32
  }
  func.func @transform_2(%arg0: i32) -> (i32, i32) {
    %c0_i32 = arith.constant 0 : i32
    %c0_i32_0 = arith.constant 0 : i32
    %c0_i32_1 = arith.constant 0 : i32
    return %c0_i32, %c0_i32_0 : i32, i32
  }
  func.func @transform_3(%arg0: i32) -> (i32, i32) {
    %c0_i32 = arith.constant 0 : i32
    %c0_i32_0 = arith.constant 0 : i32
    %c0_i32_1 = arith.constant 0 : i32
    return %c0_i32, %c0_i32_0 : i32, i32
  }
  func.func @transform_4(%arg0: i32) -> (i32, i32) {
    %c0_i32 = arith.constant 0 : i32
    %c0_i32_0 = arith.constant 0 : i32
    %c0_i32_1 = arith.constant 0 : i32
    return %c0_i32, %c0_i32_0 : i32, i32
  }
  func.func @transform_5(%arg0: i32) -> (i32, i32) {
    %c0_i32 = arith.constant 0 : i32
    %c0_i32_0 = arith.constant 0 : i32
    %c0_i32_1 = arith.constant 0 : i32
    return %c0_i32, %c0_i32_0 : i32, i32
  }
  func.func @transform_6(%arg0: i32) -> (i32, i32) {
    %c0_i32 = arith.constant 0 : i32
    %c0_i32_0 = arith.constant 0 : i32
    %c0_i32_1 = arith.constant 0 : i32
    return %c0_i32, %c0_i32_0 : i32, i32
  }
  func.func @transform_7(%arg0: i32) -> (i32, i32) {
    %c0_i32 = arith.constant 0 : i32
    %c0_i32_0 = arith.constant 0 : i32
    %c0_i32_1 = arith.constant 0 : i32
    return %c0_i32, %c0_i32_0 : i32, i32
  }
  func.func @transform_8(%arg0: i32) -> (i32, i32, i32) {
    %c0_i32 = arith.constant 0 : i32
    %c0_i32_0 = arith.constant 0 : i32
    %c0_i32_1 = arith.constant 0 : i32
    return %arg0, %c0_i32, %c0_i32_0 : i32, i32, i32
  }
  func.func @transform_9(%arg0: i32) -> (i32, i32, i32, i32) {
    %c0_i32 = arith.constant 0 : i32
    %c0_i32_0 = arith.constant 0 : i32
    %c0_i32_1 = arith.constant 0 : i32
    %c0_i32_2 = arith.constant 0 : i32
    return %arg0, %c0_i32, %c0_i32_0, %c0_i32_1 : i32, i32, i32, i32
  }
}

</mosaic_0001>

<llo_original>
// kernel: tpu_custom_call.1
$region0: #{tpu_custom_call.1}
  #allocation0 [shape = 'u32[]', space=smem, size = 0x4, offset = 0x4, fixed_abs, tag = 'smem constant byte address 0x4 - core index']
  #allocation1 [shape = 'u32[144,128]{1,0:T(1,128)}', space=vmem, size = 0x12000, scoped, tag = 'internal scratch']
  %s0 = inlined_call_operand.hbm [shape: bf16[2,8,32], index: 0, kind: input, shape index: {}]
  %s1 = inlined_call_operand.hbm [shape: bf16[2,8,32], index: 1, kind: input, shape index: {}]
  %s2 = inlined_call_operand.hbm [shape: bf16[32,32], index: 2, kind: input, shape index: {}]
  %s3 = inlined_call_operand.vmem [shape: f32[1,32], index: 3, kind: input, shape index: {}]
  %s4 = inlined_call_operand.hbm [shape: bf16[32,64], index: 4, kind: input, shape index: {}]
  %s5 = inlined_call_operand.vmem [shape: f32[1,64], index: 5, kind: input, shape index: {}]
  %s6 = inlined_call_operand.vmem [shape: bf16[32,32], index: 6, kind: input, shape index: {}]
  %s7 = inlined_call_operand.vmem [shape: f32[1,32], index: 7, kind: input, shape index: {}]
  %s8 = inlined_call_operand.hbm [shape: f32[2,8,32], index: 8, kind: output, shape index: {0}]
  %s9 = inlined_call_operand.hbm [shape: f32[2,4,8,8], index: 9, kind: output, shape index: {1}]
  %10 = xla_tuple %s8, %s9
  %s11 = sld [smem:[#allocation0]]
  $region89: #{tpu_custom_call.1} parent=0
    _
  %s13 = ssub.s32 1, %s11
  %s14 = scalar_select 0, %s13, %s11
  $region1: #{tpu_custom_call.1} parent=0
    #allocation2 [shape = 'u8[4096]{0}', space=vmem, size = 0x1000, scoped, tag = 'input window, operand 0']
    #allocation3 [shape = 's32[2]{0}', space=sflag, size = 0x8, scoped, tag = 'scoped memory for tpu_custom_call.1']
    #allocation4 [shape = 's32[2]{0}', space=sflag, size = 0x8, scoped, tag = 'scoped memory for tpu_custom_call.1']
    #allocation5 [shape = 'u8[4096]{0}', space=vmem, size = 0x1000, scoped, tag = 'input window, operand 1']
    #allocation6 [shape = 's32[2]{0}', space=sflag, size = 0x8, scoped, tag = 'scoped memory for tpu_custom_call.1']
    #allocation7 [shape = 'u8[8192]{0}', space=vmem, size = 0x2000, scoped, tag = 'input window, operand 2, single buffered']
    #allocation8 [shape = 'u8[8192]{0}', space=vmem, size = 0x2000, scoped, tag = 'input window, operand 4, single buffered']
    #allocation9 [shape = 's32[1]{0}', space=sflag, size = 0x4, scoped, tag = 'scoped memory for tpu_custom_call.1']
    #allocation10 [shape = 'u8[8192]{0}', space=vmem, size = 0x2000, scoped, tag = 'output window, operand 0']
    #allocation11 [shape = 'u8[32768]{0}', space=vmem, size = 0x8000, scoped, tag = 'output window, operand 1']
    #allocation12 [shape = 's32[2]{0}', space=sflag, size = 0x8, scoped, tag = 'scoped memory for tpu_custom_call.1']
    %15 = vsyncpa [#allocation3], 0
    %s16 = scalar_lea.sflag [#allocation3], 1
    %17 = vsyncpa %s16, 0
    %18 = vsyncpa [#allocation6], 0
    %s19 = scalar_lea.sflag [#allocation6], 1
    %20 = vsyncpa %s19, 0
    %21 = vsyncpa [#allocation9], 0
    %22 = vsyncpa [#allocation4], 0
    %s23 = scalar_lea.sflag [#allocation4], 1
    %24 = vsyncpa %s23, 0
    %25 = vsyncpa [#allocation12], 0
    %s26 = scalar_lea.sflag [#allocation12], 1
    %27 = vsyncpa %s26, 0
    loop: start=0, step=1, limit=4
    $region2: #{tpu_custom_call.1} parent=1 // loop_pre_header
      _
    $region3: #{tpu_custom_call.1} parent=1 // loop_header
      %s29 = sphi 0, %s33
      %p30 = scmp.ge.s32.totalorder %s29, 4
      %s39 = sphi 0, %s41
      %s42 = sphi 0, %s39
      %s43 = sphi 0, %s42
      %s59 = sphi 0, %s43
      %s65 = sphi 0, %s67
      %s68 = sphi 0, %s65
      %s69 = sphi 0, %s68
      %s85 = sphi 0, %s69
      %s89 = sphi 0, %s89
      %s91 = sphi 0, %s89
      %s92 = sphi 0, %s91
      %s106 = sphi 0, %s92
      %s110 = sphi 0, %s110
      %s112 = sphi 0, %s110
      %s113 = sphi 0, %s112
      %s127 = sphi 0, %s113
      %s131 = sphi 0, %s131
      %s133 = sphi 0, %s131
      %s134 = sphi 0, %s133
      %s148 = sphi 0, %s134
      %s152 = sphi 0, %s152
      %s154 = sphi 0, %s152
      %s155 = sphi 0, %s154
      %s169 = sphi 0, %s155
      %s173 = sphi 0, %s173
      %s175 = sphi 0, %s173
      %s176 = sphi 0, %s175
      %s190 = sphi 0, %s176
      %s194 = sphi 0, %s194
      %s196 = sphi 0, %s194
      %s197 = sphi 0, %s196
      %s211 = sphi 0, %s197
      %s217 = sphi 0, %s219
      %s220 = sphi 0, %s217
      %s221 = sphi 0, %s220
      %s237 = sphi 0, %s221
      %s243 = sphi 0, %s245
      %s246 = sphi 0, %s243
      %s247 = sphi 0, %s246
      %s263 = sphi 0, %s247
    $region4: #{tpu_custom_call.1} parent=1 // loop_header_branch
      %32 = sbr.rel (%p30) target = $region8
    $region5: #{tpu_custom_call.1} parent=1 // loop_body
      %s34 = ssub.s32 %s29, 1
      %s35 = ssub.s32 %s29, 2
      %s36 = sadd.s32 %s29, 1
      %s37 = ssub.s32 %s29, %s36
      %p38 = scmp.eq.s32.totalorder %s37, 0
      %s40 = sadd.s32 %s39, 1
      %s41 = scalar_select %p38, %s39, %s40
      %p44 = pneg %p38
      %p45 = scmp.eq.s32.totalorder %s29, 1
      %p46 = por %p44, %p45
      %p47 = scmp.ne.s32.totalorder %s39, %s42
      %p48 = scmp.eq.s32.totalorder %s29, 0
      %p49 = por %p47, %p48
      %p50 = scmp.ne.s32.totalorder %s39, %s42
      %p51 = scmp.eq.s32.totalorder %s34, 1
      %p52 = por %p50, %p51
      %p53 = scmp.ne.s32.totalorder %s42, %s43
      %p54 = scmp.eq.s32.totalorder %s34, 0
      %p55 = por %p53, %p54
      %p56 = scmp.ne.s32.totalorder %s42, %s43
      %p57 = scmp.eq.s32.totalorder %s35, 1
      %p58 = por %p56, %p57
      %p60 = scmp.ne.s32.totalorder %s43, %s59
      %p61 = scmp.eq.s32.totalorder %s35, 0
      %p62 = por %p60, %p61
      %s63 = ssub.s32 %s29, %s36
      %p64 = scmp.eq.s32.totalorder %s63, 0
      %s66 = sadd.s32 %s65, 1
      %s67 = scalar_select %p64, %s65, %s66
      %p70 = pneg %p64
      %p71 = scmp.eq.s32.totalorder %s29, 1
      %p72 = por %p70, %p71
      %p73 = scmp.ne.s32.totalorder %s65, %s68
      %p74 = scmp.eq.s32.totalorder %s29, 0
      %p75 = por %p73, %p74
      %p76 = scmp.ne.s32.totalorder %s65, %s68
      %p77 = scmp.eq.s32.totalorder %s34, 1
      %p78 = por %p76, %p77
      %p79 = scmp.ne.s32.totalorder %s68, %s69
      %p80 = scmp.eq.s32.totalorder %s34, 0
      %p81 = por %p79, %p80
      %p82 = scmp.ne.s32.totalorder %s68, %s69
      %p83 = scmp.eq.s32.totalorder %s35, 1
      %p84 = por %p82, %p83
      %p86 = scmp.ne.s32.totalorder %s69, %s85
      %p87 = scmp.eq.s32.totalorder %s35, 0
      %p88 = por %p86, %p87
      %s90 = sadd.s32 %s89, 1
      %p93 = scmp.eq.s32.totalorder %s29, 1
      %p94 = scmp.ne.s32.totalorder %s89, %s91
      %p95 = scmp.eq.s32.totalorder %s29, 0
      %p96 = por %p94, %p95
      %p97 = scmp.ne.s32.totalorder %s89, %s91
      %p98 = scmp.eq.s32.totalorder %s34, 1
      %p99 = por %p97, %p98
      %p100 = scmp.ne.s32.totalorder %s91, %s92
      %p101 = scmp.eq.s32.totalorder %s34, 0
      %p102 = por %p100, %p101
      %p103 = scmp.ne.s32.totalorder %s91, %s92
      %p104 = scmp.eq.s32.totalorder %s35, 1
      %p105 = por %p103, %p104
      %p107 = scmp.ne.s32.totalorder %s92, %s106
      %p108 = scmp.eq.s32.totalorder %s35, 0
      %p109 = por %p107, %p108
      %s111 = sadd.s32 %s110, 1
      %p114 = scmp.eq.s32.totalorder %s29, 1
      %p115 = scmp.ne.s32.totalorder %s110, %s112
      %p116 = scmp.eq.s32.totalorder %s29, 0
      %p117 = por %p115, %p116
      %p118 = scmp.ne.s32.totalorder %s110, %s112
      %p119 = scmp.eq.s32.totalorder %s34, 1
      %p120 = por %p118, %p119
      %p121 = scmp.ne.s32.totalorder %s112, %s113
      %p122 = scmp.eq.s32.totalorder %s34, 0
      %p123 = por %p121, %p122
      %p124 = scmp.ne.s32.totalorder %s112, %s113
      %p125 = scmp.eq.s32.totalorder %s35, 1
      %p126 = por %p124, %p125
      %p128 = scmp.ne.s32.totalorder %s113, %s127
      %p129 = scmp.eq.s32.totalorder %s35, 0
      %p130 = por %p128, %p129
      %s132 = sadd.s32 %s131, 1
      %p135 = scmp.eq.s32.totalorder %s29, 1
      %p136 = scmp.ne.s32.totalorder %s131, %s133
      %p137 = scmp.eq.s32.totalorder %s29, 0
      %p138 = por %p136, %p137
      %p139 = scmp.ne.s32.totalorder %s131, %s133
      %p140 = scmp.eq.s32.totalorder %s34, 1
      %p141 = por %p139, %p140
      %p142 = scmp.ne.s32.totalorder %s133, %s134
      %p143 = scmp.eq.s32.totalorder %s34, 0
      %p144 = por %p142, %p143
      %p145 = scmp.ne.s32.totalorder %s133, %s134
      %p146 = scmp.eq.s32.totalorder %s35, 1
      %p147 = por %p145, %p146
      %p149 = scmp.ne.s32.totalorder %s134, %s148
      %p150 = scmp.eq.s32.totalorder %s35, 0
      %p151 = por %p149, %p150
      %s153 = sadd.s32 %s152, 1
      %p156 = scmp.eq.s32.totalorder %s29, 1
      %p157 = scmp.ne.s32.totalorder %s152, %s154
      %p158 = scmp.eq.s32.totalorder %s29, 0
      %p159 = por %p157, %p158
      %p160 = scmp.ne.s32.totalorder %s152, %s154
      %p161 = scmp.eq.s32.totalorder %s34, 1
      %p162 = por %p160, %p161
      %p163 = scmp.ne.s32.totalorder %s154, %s155
      %p164 = scmp.eq.s32.totalorder %s34, 0
      %p165 = por %p163, %p164
      %p166 = scmp.ne.s32.totalorder %s154, %s155
      %p167 = scmp.eq.s32.totalorder %s35, 1
      %p168 = por %p166, %p167
      %p170 = scmp.ne.s32.totalorder %s155, %s169
      %p171 = scmp.eq.s32.totalorder %s35, 0
      %p172 = por %p170, %p171
      %s174 = sadd.s32 %s173, 1
      %p177 = scmp.eq.s32.totalorder %s29, 1
      %p178 = scmp.ne.s32.totalorder %s173, %s175
      %p179 = scmp.eq.s32.totalorder %s29, 0
      %p180 = por %p178, %p179
      %p181 = scmp.ne.s32.totalorder %s173, %s175
      %p182 = scmp.eq.s32.totalorder %s34, 1
      %p183 = por %p181, %p182
      %p184 = scmp.ne.s32.totalorder %s175, %s176
      %p185 = scmp.eq.s32.totalorder %s34, 0
      %p186 = por %p184, %p185
      %p187 = scmp.ne.s32.totalorder %s175, %s176
      %p188 = scmp.eq.s32.totalorder %s35, 1
      %p189 = por %p187, %p188
      %p191 = scmp.ne.s32.totalorder %s176, %s190
      %p192 = scmp.eq.s32.totalorder %s35, 0
      %p193 = por %p191, %p192
      %s195 = sadd.s32 %s194, 1
      %p198 = scmp.eq.s32.totalorder %s29, 1
      %p199 = scmp.ne.s32.totalorder %s194, %s196
      %p200 = scmp.eq.s32.totalorder %s29, 0
      %p201 = por %p199, %p200
      %p202 = scmp.ne.s32.totalorder %s194, %s196
      %p203 = scmp.eq.s32.totalorder %s34, 1
      %p204 = por %p202, %p203
      %p205 = scmp.ne.s32.totalorder %s196, %s197
      %p206 = scmp.eq.s32.totalorder %s34, 0
      %p207 = por %p205, %p206
      %p208 = scmp.ne.s32.totalorder %s196, %s197
      %p209 = scmp.eq.s32.totalorder %s35, 1
      %p210 = por %p208, %p209
      %p212 = scmp.ne.s32.totalorder %s197, %s211
      %p213 = scmp.eq.s32.totalorder %s35, 0
      %p214 = por %p212, %p213
      %s215 = ssub.s32 %s29, %s36
      %p216 = scmp.eq.s32.totalorder %s215, 0
      %s218 = sadd.s32 %s217, 1
      %s219 = scalar_select %p216, %s217, %s218
      %p222 = pneg %p216
      %p223 = scmp.eq.s32.totalorder %s29, 1
      %p224 = por %p222, %p223
      %p225 = scmp.ne.s32.totalorder %s217, %s220
      %p226 = scmp.eq.s32.totalorder %s29, 0
      %p227 = por %p225, %p226
      %p228 = scmp.ne.s32.totalorder %s217, %s220
      %p229 = scmp.eq.s32.totalorder %s34, 1
      %p230 = por %p228, %p229
      %p231 = scmp.ne.s32.totalorder %s220, %s221
      %p232 = scmp.eq.s32.totalorder %s34, 0
      %p233 = por %p231, %p232
      %p234 = scmp.ne.s32.totalorder %s220, %s221
      %p235 = scmp.eq.s32.totalorder %s35, 1
      %p236 = por %p234, %p235
      %p238 = scmp.ne.s32.totalorder %s221, %s237
      %p239 = scmp.eq.s32.totalorder %s35, 0
      %p240 = por %p238, %p239
      %s241 = ssub.s32 %s29, %s36
      %p242 = scmp.eq.s32.totalorder %s241, 0
      %s244 = sadd.s32 %s243, 1
      %s245 = scalar_select %p242, %s243, %s244
      %p248 = pneg %p242
      %p249 = scmp.eq.s32.totalorder %s29, 1
      %p250 = por %p248, %p249
      %p251 = scmp.ne.s32.totalorder %s243, %s246
      %p252 = scmp.eq.s32.totalorder %s29, 0
      %p253 = por %p251, %p252
      %p254 = scmp.ne.s32.totalorder %s243, %s246
      %p255 = scmp.eq.s32.totalorder %s34, 1
      %p256 = por %p254, %p255
      %p257 = scmp.ne.s32.totalorder %s246, %s247
      %p258 = scmp.eq.s32.totalorder %s34, 0
      %p259 = por %p257, %p258
      %p260 = scmp.ne.s32.totalorder %s246, %s247
      %p261 = scmp.eq.s32.totalorder %s35, 1
      %p262 = por %p260, %p261
      %p264 = scmp.ne.s32.totalorder %s247, %s263
      %p265 = scmp.eq.s32.totalorder %s35, 0
      %p266 = por %p264, %p265
      %p267 = scmp.le.s32.totalorder 1, %s29
      %p268 = scmp.lt.s32.totalorder %s29, 3
      %p269 = pnand %p267, %p268
      %p270 = pneg %p269
      // Predicated region
      $region9: #{tpu_custom_call.1} parent=5 // pred_check
        _
      $region10: #{tpu_custom_call.1} parent=5 // pred_check_branch
        %272 = sbr.rel (%p269) target = $region12
      $region11: #{tpu_custom_call.1} parent=5 // pred_region
        %s273 = ssub.s32 %s29, 1
        // Predicated region
        $region13: #{tpu_custom_call.1} parent=11 // pred_check
          %p274 = pneg %p102
        $region14: #{tpu_custom_call.1} parent=11 // pred_check_branch
          %276 = sbr.rel (%p274) target = $region16
        $region15: #{tpu_custom_call.1} parent=11 // pred_region
          %s278 = ssub.s32 256, 256
          %279 = vsyncadd [#allocation6], %s278
          %s280 = sshll.u32 [#allocation7], 4
          %s281 = int_to_ptr.vmem [resolvable:$true] %s280
          %286 = dma.hbm_to_vmem [thread:$0]  %s2, 256, %s281, [#allocation6], 64, 64, 4
        $region16: #{tpu_custom_call.1} parent=11 // pred_fallthru
          _
        // Predicated region
        $region17: #{tpu_custom_call.1} parent=11 // pred_check
          %p287 = pneg %p123
        $region18: #{tpu_custom_call.1} parent=11 // pred_check_branch
          %289 = sbr.rel (%p287) target = $region20
        $region19: #{tpu_custom_call.1} parent=11 // pred_region
          _
        $region20: #{tpu_custom_call.1} parent=11 // pred_fallthru
          _
        // Predicated region
        $region21: #{tpu_custom_call.1} parent=11 // pred_check
          %p290 = pneg %p144
        $region22: #{tpu_custom_call.1} parent=11 // pred_check_branch
          %292 = sbr.rel (%p290) target = $region24
        $region23: #{tpu_custom_call.1} parent=11 // pred_region
          %s294 = ssub.s32 256, 256
          %295 = vsyncadd [#allocation9], %s294
          %s296 = sshll.u32 [#allocation8], 4
          %s297 = int_to_ptr.vmem [resolvable:$true] %s296
          %302 = dma.hbm_to_vmem [thread:$0]  %s4, 256, %s297, [#allocation9], 64, 64, 4
        $region24: #{tpu_custom_call.1} parent=11 // pred_fallthru
          _
        // Predicated region
        $region25: #{tpu_custom_call.1} parent=11 // pred_check
          %p303 = pneg %p165
        $region26: #{tpu_custom_call.1} parent=11 // pred_check_branch
          %305 = sbr.rel (%p303) target = $region28
        $region27: #{tpu_custom_call.1} parent=11 // pred_region
          _
        $region28: #{tpu_custom_call.1} parent=11 // pred_fallthru
          _
        // Predicated region
        $region29: #{tpu_custom_call.1} parent=11 // pred_check
          %p306 = pneg %p186
        $region30: #{tpu_custom_call.1} parent=11 // pred_check_branch
          %308 = sbr.rel (%p306) target = $region32
        $region31: #{tpu_custom_call.1} parent=11 // pred_region
          _
        $region32: #{tpu_custom_call.1} parent=11 // pred_fallthru
          _
        // Predicated region
        $region33: #{tpu_custom_call.1} parent=11 // pred_check
          %p309 = pneg %p207
        $region34: #{tpu_custom_call.1} parent=11 // pred_check_branch
          %311 = sbr.rel (%p309) target = $region36
        $region35: #{tpu_custom_call.1} parent=11 // pred_region
          _
        $region36: #{tpu_custom_call.1} parent=11 // pred_fallthru
          _
      $region12: #{tpu_custom_call.1} parent=5 // pred_fallthru
        _
      %p312 = scmp.lt.s32.totalorder %s29, 2
      // Predicated region
      $region37: #{tpu_custom_call.1} parent=5 // pred_check
        %p313 = pneg %p312
      $region38: #{tpu_custom_call.1} parent=5 // pred_check_branch
        %315 = sbr.rel (%p313) target = $region40
      $region39: #{tpu_custom_call.1} parent=5 // pred_region
        // Predicated region
        $region41: #{tpu_custom_call.1} parent=39 // pred_check
          %p316 = pneg %p49
        $region42: #{tpu_custom_call.1} parent=39 // pred_check_branch
          %318 = sbr.rel (%p316) target = $region44
        $region43: #{tpu_custom_call.1} parent=39 // pred_region
          %s319 = sand.u32 %s39, 1
          %s320 = scalar_lea.sflag [#allocation3], %s319
          %s321 = sand.u32 %s39, 1
          %s322 = smul.addr %s321, 4
          %s323 = scalar_lea.vmem [#allocation2], %s322
          %s325 = ssub.s32 64, 64
          %326 = vsyncadd %s320, %s325
          %s327 = smul.addr %s29, 64
          %s328 = scalar_lea.hbm %s0, %s327
          %s330 = sshll.u32 %s323, 4
          %s331 = int_to_ptr.vmem [resolvable:$true] %s330
          %333 = dma.hbm_to_vmem [thread:$0]  %s328, 64, %s331, %s320
        $region44: #{tpu_custom_call.1} parent=39 // pred_fallthru
          _
        // Predicated region
        $region45: #{tpu_custom_call.1} parent=39 // pred_check
          %p334 = pneg %p75
        $region46: #{tpu_custom_call.1} parent=39 // pred_check_branch
          %336 = sbr.rel (%p334) target = $region48
        $region47: #{tpu_custom_call.1} parent=39 // pred_region
          %s337 = sand.u32 %s29, 1
          %s338 = scalar_lea.sflag [#allocation6], %s337
          %s339 = sand.u32 %s65, 1
          %s340 = smul.addr %s339, 4
          %s341 = scalar_lea.vmem [#allocation5], %s340
          %s343 = ssub.s32 64, 64
          %344 = vsyncadd %s338, %s343
          %s345 = smul.addr %s29, 64
          %s346 = scalar_lea.hbm %s1, %s345
          %s348 = sshll.u32 %s341, 4
          %s349 = int_to_ptr.vmem [resolvable:$true] %s348
          %351 = dma.hbm_to_vmem [thread:$0]  %s346, 64, %s349, %s338
        $region48: #{tpu_custom_call.1} parent=39 // pred_fallthru
          _
      $region40: #{tpu_custom_call.1} parent=5 // pred_fallthru
        _
      %p352 = scmp.le.s32.totalorder 1, %s29
      %p353 = scmp.lt.s32.totalorder %s29, 3
      %p354 = pnand %p352, %p353
      %p355 = pneg %p354
      // Predicated region
      $region49: #{tpu_custom_call.1} parent=5 // pred_check
        _
      $region50: #{tpu_custom_call.1} parent=5 // pred_check_branch
        %357 = sbr.rel (%p354) target = $region52
      $region51: #{tpu_custom_call.1} parent=5 // pred_region
        %s358 = ssub.s32 %s29, 1
        %s359 = sand.u32 %s42, 1
        %s360 = scalar_lea.sflag [#allocation3], %s359
        %s361 = sand.u32 %s42, 1
        %s362 = smul.addr %s361, 4
        %s363 = scalar_lea.vmem [#allocation2], %s362
        // Predicated region
        $region53: #{tpu_custom_call.1} parent=51 // pred_check
          %p364 = pneg %p55
        $region54: #{tpu_custom_call.1} parent=51 // pred_check_branch
          %366 = sbr.rel (%p364) target = $region56
        $region55: #{tpu_custom_call.1} parent=51 // pred_region
          %367 = dma.done %s360, 64
        $region56: #{tpu_custom_call.1} parent=51 // pred_fallthru
          _
        %s368 = sand.u32 %s34, 1
        %s369 = scalar_lea.sflag [#allocation6], %s368
        %s370 = sand.u32 %s68, 1
        %s371 = smul.addr %s370, 4
        %s372 = scalar_lea.vmem [#allocation5], %s371
        // Predicated region
        $region57: #{tpu_custom_call.1} parent=51 // pred_check
          %p373 = pneg %p81
        $region58: #{tpu_custom_call.1} parent=51 // pred_check_branch
          %375 = sbr.rel (%p373) target = $region60
        $region59: #{tpu_custom_call.1} parent=51 // pred_region
          %376 = dma.done %s369, 64
        $region60: #{tpu_custom_call.1} parent=51 // pred_fallthru
          _
        // Predicated region
        $region61: #{tpu_custom_call.1} parent=51 // pred_check
          %p377 = pneg %p102
        $region62: #{tpu_custom_call.1} parent=51 // pred_check_branch
          %379 = sbr.rel (%p377) target = $region64
        $region63: #{tpu_custom_call.1} parent=51 // pred_region
          %380 = dma.done [#allocation6], 256
        $region64: #{tpu_custom_call.1} parent=51 // pred_fallthru
          _
        // Predicated region
        $region65: #{tpu_custom_call.1} parent=51 // pred_check
          %p381 = pneg %p144
        $region66: #{tpu_custom_call.1} parent=51 // pred_check_branch
          %383 = sbr.rel (%p381) target = $region68
        $region67: #{tpu_custom_call.1} parent=51 // pred_region
          %384 = dma.done [#allocation9], 256
        $region68: #{tpu_custom_call.1} parent=51 // pred_fallthru
          _
        %s385 = sand.u32 %s42, 1
        %s386 = scalar_lea.sflag [#allocation3], %s385
        %s387 = sand.u32 %s42, 1
        %s388 = smul.addr %s387, 4
        %s389 = scalar_lea.vmem [#allocation2], %s388
        %p390 = pneg %p55
        %p391 = pneg %p52
        %s392 = sand.u32 %s34, 1
        %s393 = scalar_lea.sflag [#allocation6], %s392
        %s394 = sand.u32 %s68, 1
        %s395 = smul.addr %s394, 4
        %s396 = scalar_lea.vmem [#allocation5], %s395
        %p397 = pneg %p81
        %p398 = pneg %p78
        %p399 = pneg %p102
        %p400 = pneg %p99
        %p401 = pneg %p123
        %p402 = pneg %p120
        %p403 = pneg %p144
        %p404 = pneg %p141
        %p405 = pneg %p165
        %p406 = pneg %p162
        %p407 = pneg %p186
        %p408 = pneg %p183
        %p409 = pneg %p207
        %p410 = pneg %p204
        %p411 = pneg %p233
        %p412 = pneg %p230
        %s413 = sand.u32 %s220, 1
        %s414 = scalar_lea.sflag [#allocation4], %s413
        %s415 = sand.u32 %s220, 1
        %s416 = smul.addr %s415, 8
        %s417 = scalar_lea.vmem [#allocation10], %s416
        %p418 = pneg %p259
        %p419 = pneg %p256
        %s420 = sand.u32 %s246, 1
        %s421 = scalar_lea.sflag [#allocation12], %s420
        %s422 = sand.u32 %s246, 1
        %s423 = smul.addr %s422, 32
        %s424 = scalar_lea.vmem [#allocation11], %s423
        %v426 = vld [vmem:[%s363] sm:$0xf]
        %v427 = vld [vmem:[%s372] sm:$0xf]
        %v428 = vld [vmem:[#allocation7] sm:$0xf]
        %v429 = vld [vmem:[#allocation7 + $0x4] sm:$0xf]
        %v430 = vld [vmem:[#allocation7 + $0x8] sm:$0xf]
        %v431 = vld [vmem:[#allocation7 + $0xc] sm:$0xf]
        %v432 = vld [vmem:[%s3] sm:$0x1]
        %v434 = vlaneseq
        %v435 = vshrl.u32 %v434, 7
        %v436 = vsub.s32 0, %v435
        %v437 = vrot.slane %v432, %v436
        %v443 = vunpack.c.l.b16 %v428
        %v444 = vunpack.c.l.b16 %v429
        %v445 = vunpack.c.l.b16 %v430
        %v446 = vunpack.c.l.b16 %v431
        %v447 = vpack.c.b16 %v444, %v443
        %v448 = vpack.c.b16 %v446, %v445
        %vm451 = vcmask 261120
        %v453 = vsel %vm451, %v426, 0
        %455 = vmatprep.subr.bf16.mxu0 0
        %456 = vmatpush1.bf16.msra.mxu0 %v447
        %457 = vmatprep.subr.bf16.mxu0 0
        %458 = vmatpush1.bf16.msra.mxu0 %v448
        %459 = vmatprep.subr.bf16.mxu0 0
        %460 = vmatpush1.bf16.msra.mxu0 0
        %461 = vmatprep.subr.bf16.mxu0 0
        %462 = vmatpush1.bf16.msra.mxu0 0
        %463 = vmatprep.subr.bf16.mxu0 0
        %464 = vmatpush1.bf16.msra.mxu0 0
        %465 = vmatprep.subr.bf16.mxu0 0
        %466 = vmatpush1.bf16.msra.mxu0 0
        %467 = vmatprep.subr.bf16.mxu0 0
        %468 = vmatpush1.bf16.msra.mxu0 0
        %469 = vmatprep.subr.bf16.mxu0 0
        %470 = vmatpush1.bf16.msra.mxu0 0
        %471 = vmatprep.subr.bf16.mxu0 0
        %472 = vmatpush1.bf16.msra.mxu0 0
        %473 = vmatprep.subr.bf16.mxu0 0
        %474 = vmatpush1.bf16.msra.mxu0 0
        %475 = vmatprep.subr.bf16.mxu0 0
        %476 = vmatpush1.bf16.msra.mxu0 0
        %477 = vmatprep.subr.bf16.mxu0 0
        %478 = vmatpush1.bf16.msra.mxu0 0
        %479 = vmatprep.subr.bf16.mxu0 0
        %480 = vmatpush1.bf16.msra.mxu0 0
        %481 = vmatprep.subr.bf16.mxu0 0
        %482 = vmatpush1.bf16.msra.mxu0 0
        %483 = vmatprep.subr.bf16.mxu0 0
        %484 = vmatpush1.bf16.msra.mxu0 0
        %485 = vmatprep.subr.bf16.mxu0 0
        %486 = vmatpush1.bf16.msra.mxu0 0
        %487 = vmatprep.mubr.bf16.mxu0 0
        %488 = vmatmul.mubr.bf16.gmra.mrb[0].mxu0 %v453
        %v489 = vpop.f32.mrb[0].mxu0
        %v490 = vadd.f32 %v437, %v489
        %v491 = vpop.f32.mrb[0].mxu0
        %v492 = vpop.f32.mrb[0].mxu0
        %v493 = vpop.f32.mrb[0].mxu0
        %494 = vdwg.mxu0
        %v495 = vld [vmem:[#allocation8] sm:$0xf]
        %v496 = vld [vmem:[#allocation8 + $0x4] sm:$0xf]
        %v497 = vld [vmem:[#allocation8 + $0x8] sm:$0xf]
        %v498 = vld [vmem:[#allocation8 + $0xc] sm:$0xf]
        %v499 = vld [vmem:[%s5] sm:$0x1]
        %v501 = vlaneseq
        %v502 = vshrl.u32 %v501, 7
        %v503 = vsub.s32 0, %v502
        %v504 = vrot.slane %v499, %v503
        %v510 = vunpack.c.l.b16 %v495
        %v511 = vunpack.c.l.b16 %v496
        %v512 = vunpack.c.l.b16 %v497
        %v513 = vunpack.c.l.b16 %v498
        %v514 = vpack.c.b16 %v511, %v510
        %v515 = vpack.c.b16 %v513, %v512
        %v519 = vsel %vm451, %v427, 0
        %521 = vmatprep.subr.bf16.mxu0 0
        %522 = vmatpush1.bf16.msra.mxu0 %v514
        %523 = vmatprep.subr.bf16.mxu0 0
        %524 = vmatpush1.bf16.msra.mxu0 %v515
        %525 = vmatprep.subr.bf16.mxu0 0
        %526 = vmatpush1.bf16.msra.mxu0 0
        %527 = vmatprep.subr.bf16.mxu0 0
        %528 = vmatpush1.bf16.msra.mxu0 0
        %529 = vmatprep.subr.bf16.mxu0 0
        %530 = vmatpush1.bf16.msra.mxu0 0
        %531 = vmatprep.subr.bf16.mxu0 0
        %532 = vmatpush1.bf16.msra.mxu0 0
        %533 = vmatprep.subr.bf16.mxu0 0
        %534 = vmatpush1.bf16.msra.mxu0 0
        %535 = vmatprep.subr.bf16.mxu0 0
        %536 = vmatpush1.bf16.msra.mxu0 0
        %537 = vmatprep.subr.bf16.mxu0 0
        %538 = vmatpush1.bf16.msra.mxu0 0
        %539 = vmatprep.subr.bf16.mxu0 0
        %540 = vmatpush1.bf16.msra.mxu0 0
        %541 = vmatprep.subr.bf16.mxu0 0
        %542 = vmatpush1.bf16.msra.mxu0 0
        %543 = vmatprep.subr.bf16.mxu0 0
        %544 = vmatpush1.bf16.msra.mxu0 0
        %545 = vmatprep.subr.bf16.mxu0 0
        %546 = vmatpush1.bf16.msra.mxu0 0
        %547 = vmatprep.subr.bf16.mxu0 0
        %548 = vmatpush1.bf16.msra.mxu0 0
        %549 = vmatprep.subr.bf16.mxu0 0
        %550 = vmatpush1.bf16.msra.mxu0 0
        %551 = vmatprep.subr.bf16.mxu0 0
        %552 = vmatpush1.bf16.msra.mxu0 0
        %553 = vmatprep.mubr.bf16.mxu0 0
        %554 = vmatmul.mubr.bf16.gmra.mrb[0].mxu0 %v519
        %v555 = vpop.f32.mrb[0].mxu0
        %v556 = vadd.f32 %v504, %v555
        %v557 = vpop.f32.mrb[0].mxu0
        %v558 = vpop.f32.mrb[0].mxu0
        %v559 = vpop.f32.mrb[0].mxu0
        %560 = vdwg.mxu0
        %v561 = vpack.c.bf16 %v490, %v490
        %v562 = vpack.c.bf16 %v556, %v556
        %vm563 = vcmask 64512
        %v565 = vsel %vm563, %v561, 0
        %v568 = vsel %vm563, %v562, 0
        %570 = vmatprep.subr.bf16.mxu0 0
        %571 = vmatpush1.bf16.xpose.msra.mxu0 %v568
        %572 = vmatprep.subr.bf16.mxu0 0
        %573 = vmatpush1.bf16.xpose.msra.mxu0 0
        %574 = vmatprep.subr.bf16.mxu0 0
        %575 = vmatpush1.bf16.xpose.msra.mxu0 0
        %576 = vmatprep.subr.bf16.mxu0 0
        %577 = vmatpush1.bf16.xpose.msra.mxu0 0
        %578 = vmatprep.subr.bf16.mxu0 0
        %579 = vmatpush1.bf16.xpose.msra.mxu0 0
        %580 = vmatprep.subr.bf16.mxu0 0
        %581 = vmatpush1.bf16.xpose.msra.mxu0 0
        %582 = vmatprep.subr.bf16.mxu0 0
        %583 = vmatpush1.bf16.xpose.msra.mxu0 0
        %584 = vmatprep.subr.bf16.mxu0 0
        %585 = vmatpush1.bf16.xpose.msra.mxu0 0
        %586 = vmatprep.subr.bf16.mxu0 0
        %587 = vmatpush1.bf16.xpose.msra.mxu0 0
        %588 = vmatprep.subr.bf16.mxu0 0
        %589 = vmatpush1.bf16.xpose.msra.mxu0 0
        %590 = vmatprep.subr.bf16.mxu0 0
        %591 = vmatpush1.bf16.xpose.msra.mxu0 0
        %592 = vmatprep.subr.bf16.mxu0 0
        %593 = vmatpush1.bf16.xpose.msra.mxu0 0
        %594 = vmatprep.subr.bf16.mxu0 0
        %595 = vmatpush1.bf16.xpose.msra.mxu0 0
        %596 = vmatprep.subr.bf16.mxu0 0
        %597 = vmatpush1.bf16.xpose.msra.mxu0 0
        %598 = vmatprep.subr.bf16.mxu0 0
        %599 = vmatpush1.bf16.xpose.msra.mxu0 0
        %600 = vmatprep.subr.bf16.mxu0 0
        %601 = vmatpush1.bf16.xpose.msra.mxu0 0
        %602 = vmatprep.mubr.bf16.mxu0 0
        %603 = vmatmul.mubr.bf16.gmra.mrb[0].mxu0 %v565
        %v604 = vpop.f32.mrb[0].mxu0
        %v605 = vadd.f32 0.0, %v604
        %v606 = vpop.f32.mrb[0].mxu0
        %v607 = vpop.f32.mrb[0].mxu0
        %v608 = vpop.f32.mrb[0].mxu0
        %609 = vdwg.mxu0
        %v610 = vmul.f32 %v605, 0.35355338
        %v611 = vsel %vm563, %v610, -inf
        %612 = vmax.xlane.f32.xlu0 %v611
        %v613 = vpop.xlane.xlu0 %612
        %v614 = vsub.f32 %v610, %v613
        %v615 = vmul.f32 %v614, 1.442695
        %v616 = vpow.pop %v615
        %v617 = vsel %vm563, %v616, 0.0
        %618 = vadd.xlane.f32.xlu0 %v617
        %v619 = vpop.xlane.xlu0 %618
        %v620 = vrcp.pop %v619
        %v621 = vmul.f32 %v616, %v620
        %622 = vst.msk [vmem:[%s424] sm:$0xff] %vm563, %v621
        %v623 = vpack.c.bf16 %v621, %v621
        %625 = vrot.lane.b32.xlu0 %v562, 96
        %v626 = vpop.permute.xlu0 %625
        %v628 = vsel %vm563, %v623, 0
        %vm630 = vcmask 1043456
        %v632 = vsel %vm630, %v626, 0
        %634 = vmatprep.subr.bf16.mxu0 0
        %635 = vmatpush1.bf16.msra.mxu0 %v632
        %636 = vmatprep.subr.bf16.mxu0 0
        %637 = vmatpush1.bf16.msra.mxu0 0
        %638 = vmatprep.subr.bf16.mxu0 0
        %639 = vmatpush1.bf16.msra.mxu0 0
        %640 = vmatprep.subr.bf16.mxu0 0
        %641 = vmatpush1.bf16.msra.mxu0 0
        %642 = vmatprep.subr.bf16.mxu0 0
        %643 = vmatpush1.bf16.msra.mxu0 0
        %644 = vmatprep.subr.bf16.mxu0 0
        %645 = vmatpush1.bf16.msra.mxu0 0
        %646 = vmatprep.subr.bf16.mxu0 0
        %647 = vmatpush1.bf16.msra.mxu0 0
        %648 = vmatprep.subr.bf16.mxu0 0
        %649 = vmatpush1.bf16.msra.mxu0 0
        %650 = vmatprep.subr.bf16.mxu0 0
        %651 = vmatpush1.bf16.msra.mxu0 0
        %652 = vmatprep.subr.bf16.mxu0 0
        %653 = vmatpush1.bf16.msra.mxu0 0
        %654 = vmatprep.subr.bf16.mxu0 0
        %655 = vmatpush1.bf16.msra.mxu0 0
        %656 = vmatprep.subr.bf16.mxu0 0
        %657 = vmatpush1.bf16.msra.mxu0 0
        %658 = vmatprep.subr.bf16.mxu0 0
        %659 = vmatpush1.bf16.msra.mxu0 0
        %660 = vmatprep.subr.bf16.mxu0 0
        %661 = vmatpush1.bf16.msra.mxu0 0
        %662 = vmatprep.subr.bf16.mxu0 0
        %663 = vmatpush1.bf16.msra.mxu0 0
        %664 = vmatprep.subr.bf16.mxu0 0
        %665 = vmatpush1.bf16.msra.mxu0 0
        %666 = vmatprep.mubr.bf16.mxu0 0
        %667 = vmatmul.mubr.bf16.gmra.mrb[0].mxu0 %v628
        %v668 = vpop.f32.mrb[0].mxu0
        %v669 = vadd.f32 0.0, %v668
        %v670 = vpop.f32.mrb[0].mxu0
        %v671 = vpop.f32.mrb[0].mxu0
        %v672 = vpop.f32.mrb[0].mxu0
        %673 = vdwg.mxu0
        %675 = vrot.lane.b32.xlu0 %v561, 120
        %v676 = vpop.permute.xlu0 %675
        %677 = vrot.lane.b32.xlu0 %v562, 120
        %v678 = vpop.permute.xlu0 %677
        %v680 = vsel %vm563, %v676, 0
        %v683 = vsel %vm563, %v678, 0
        %685 = vmatprep.subr.bf16.mxu0 0
        %686 = vmatpush1.bf16.xpose.msra.mxu0 %v683
        %687 = vmatprep.subr.bf16.mxu0 0
        %688 = vmatpush1.bf16.xpose.msra.mxu0 0
        %689 = vmatprep.subr.bf16.mxu0 0
        %690 = vmatpush1.bf16.xpose.msra.mxu0 0
        %691 = vmatprep.subr.bf16.mxu0 0
        %692 = vmatpush1.bf16.xpose.msra.mxu0 0
        %693 = vmatprep.subr.bf16.mxu0 0
        %694 = vmatpush1.bf16.xpose.msra.mxu0 0
        %695 = vmatprep.subr.bf16.mxu0 0
        %696 = vmatpush1.bf16.xpose.msra.mxu0 0
        %697 = vmatprep.subr.bf16.mxu0 0
        %698 = vmatpush1.bf16.xpose.msra.mxu0 0
        %699 = vmatprep.subr.bf16.mxu0 0
        %700 = vmatpush1.bf16.xpose.msra.mxu0 0
        %701 = vmatprep.subr.bf16.mxu0 0
        %702 = vmatpush1.bf16.xpose.msra.mxu0 0
        %703 = vmatprep.subr.bf16.mxu0 0
        %704 = vmatpush1.bf16.xpose.msra.mxu0 0
        %705 = vmatprep.subr.bf16.mxu0 0
        %706 = vmatpush1.bf16.xpose.msra.mxu0 0
        %707 = vmatprep.subr.bf16.mxu0 0
        %708 = vmatpush1.bf16.xpose.msra.mxu0 0
        %709 = vmatprep.subr.bf16.mxu0 0
        %710 = vmatpush1.bf16.xpose.msra.mxu0 0
        %711 = vmatprep.subr.bf16.mxu0 0
        %712 = vmatpush1.bf16.xpose.msra.mxu0 0
        %713 = vmatprep.subr.bf16.mxu0 0
        %714 = vmatpush1.bf16.xpose.msra.mxu0 0
        %715 = vmatprep.subr.bf16.mxu0 0
        %716 = vmatpush1.bf16.xpose.msra.mxu0 0
        %717 = vmatprep.mubr.bf16.mxu0 0
        %718 = vmatmul.mubr.bf16.gmra.mrb[0].mxu0 %v680
        %v719 = vpop.f32.mrb[0].mxu0
        %v720 = vadd.f32 0.0, %v719
        %v721 = vpop.f32.mrb[0].mxu0
        %v722 = vpop.f32.mrb[0].mxu0
        %v723 = vpop.f32.mrb[0].mxu0
        %724 = vdwg.mxu0
        %v725 = vmul.f32 %v720, 0.35355338
        %v726 = vsel %vm563, %v725, -inf
        %727 = vmax.xlane.f32.xlu0 %v726
        %v728 = vpop.xlane.xlu0 %727
        %v729 = vsub.f32 %v725, %v728
        %v730 = vmul.f32 %v729, 1.442695
        %v731 = vpow.pop %v730
        %v732 = vsel %vm563, %v731, 0.0
        %733 = vadd.xlane.f32.xlu0 %v732
        %v734 = vpop.xlane.xlu0 %733
        %v735 = vrcp.pop %v734
        %v736 = vmul.f32 %v731, %v735
        %s737 = scalar_lea.vmem %s424, 8 [#allocation11]
        %738 = vst.msk [vmem:[%s737] sm:$0xff] %vm563, %v736
        %v739 = vpack.c.bf16 %v736, %v736
        %740 = vrot.lane.b32.xlu0 %v562, 88
        %v741 = vpop.permute.xlu0 %740
        %v743 = vsel %vm563, %v739, 0
        %v746 = vsel %vm630, %v741, 0
        %748 = vmatprep.subr.bf16.mxu0 0
        %749 = vmatpush1.bf16.msra.mxu0 %v746
        %750 = vmatprep.subr.bf16.mxu0 0
        %751 = vmatpush1.bf16.msra.mxu0 0
        %752 = vmatprep.subr.bf16.mxu0 0
        %753 = vmatpush1.bf16.msra.mxu0 0
        %754 = vmatprep.subr.bf16.mxu0 0
        %755 = vmatpush1.bf16.msra.mxu0 0
        %756 = vmatprep.subr.bf16.mxu0 0
        %757 = vmatpush1.bf16.msra.mxu0 0
        %758 = vmatprep.subr.bf16.mxu0 0
        %759 = vmatpush1.bf16.msra.mxu0 0
        %760 = vmatprep.subr.bf16.mxu0 0
        %761 = vmatpush1.bf16.msra.mxu0 0
        %762 = vmatprep.subr.bf16.mxu0 0
        %763 = vmatpush1.bf16.msra.mxu0 0
        %764 = vmatprep.subr.bf16.mxu0 0
        %765 = vmatpush1.bf16.msra.mxu0 0
        %766 = vmatprep.subr.bf16.mxu0 0
        %767 = vmatpush1.bf16.msra.mxu0 0
        %768 = vmatprep.subr.bf16.mxu0 0
        %769 = vmatpush1.bf16.msra.mxu0 0
        %770 = vmatprep.subr.bf16.mxu0 0
        %771 = vmatpush1.bf16.msra.mxu0 0
        %772 = vmatprep.subr.bf16.mxu0 0
        %773 = vmatpush1.bf16.msra.mxu0 0
        %774 = vmatprep.subr.bf16.mxu0 0
        %775 = vmatpush1.bf16.msra.mxu0 0
        %776 = vmatprep.subr.bf16.mxu0 0
        %777 = vmatpush1.bf16.msra.mxu0 0
        %778 = vmatprep.subr.bf16.mxu0 0
        %779 = vmatpush1.bf16.msra.mxu0 0
        %780 = vmatprep.mubr.bf16.mxu0 0
        %781 = vmatmul.mubr.bf16.gmra.mrb[0].mxu0 %v743
        %v782 = vpop.f32.mrb[0].mxu0
        %v783 = vadd.f32 0.0, %v782
        %v784 = vpop.f32.mrb[0].mxu0
        %v785 = vpop.f32.mrb[0].mxu0
        %v786 = vpop.f32.mrb[0].mxu0
        %787 = vdwg.mxu0
        %788 = vrot.lane.b32.xlu0 %v561, 112
        %v789 = vpop.permute.xlu0 %788
        %790 = vrot.lane.b32.xlu0 %v562, 112
        %v791 = vpop.permute.xlu0 %790
        %v793 = vsel %vm563, %v789, 0
        %v796 = vsel %vm563, %v791, 0
        %798 = vmatprep.subr.bf16.mxu0 0
        %799 = vmatpush1.bf16.xpose.msra.mxu0 %v796
        %800 = vmatprep.subr.bf16.mxu0 0
        %801 = vmatpush1.bf16.xpose.msra.mxu0 0
        %802 = vmatprep.subr.bf16.mxu0 0
        %803 = vmatpush1.bf16.xpose.msra.mxu0 0
        %804 = vmatprep.subr.bf16.mxu0 0
        %805 = vmatpush1.bf16.xpose.msra.mxu0 0
        %806 = vmatprep.subr.bf16.mxu0 0
        %807 = vmatpush1.bf16.xpose.msra.mxu0 0
        %808 = vmatprep.subr.bf16.mxu0 0
        %809 = vmatpush1.bf16.xpose.msra.mxu0 0
        %810 = vmatprep.subr.bf16.mxu0 0
        %811 = vmatpush1.bf16.xpose.msra.mxu0 0
        %812 = vmatprep.subr.bf16.mxu0 0
        %813 = vmatpush1.bf16.xpose.msra.mxu0 0
        %814 = vmatprep.subr.bf16.mxu0 0
        %815 = vmatpush1.bf16.xpose.msra.mxu0 0
        %816 = vmatprep.subr.bf16.mxu0 0
        %817 = vmatpush1.bf16.xpose.msra.mxu0 0
        %818 = vmatprep.subr.bf16.mxu0 0
        %819 = vmatpush1.bf16.xpose.msra.mxu0 0
        %820 = vmatprep.subr.bf16.mxu0 0
        %821 = vmatpush1.bf16.xpose.msra.mxu0 0
        %822 = vmatprep.subr.bf16.mxu0 0
        %823 = vmatpush1.bf16.xpose.msra.mxu0 0
        %824 = vmatprep.subr.bf16.mxu0 0
        %825 = vmatpush1.bf16.xpose.msra.mxu0 0
        %826 = vmatprep.subr.bf16.mxu0 0
        %827 = vmatpush1.bf16.xpose.msra.mxu0 0
        %828 = vmatprep.subr.bf16.mxu0 0
        %829 = vmatpush1.bf16.xpose.msra.mxu0 0
        %830 = vmatprep.mubr.bf16.mxu0 0
        %831 = vmatmul.mubr.bf16.gmra.mrb[0].mxu0 %v793
        %v832 = vpop.f32.mrb[0].mxu0
        %v833 = vadd.f32 0.0, %v832
        %v834 = vpop.f32.mrb[0].mxu0
        %v835 = vpop.f32.mrb[0].mxu0
        %v836 = vpop.f32.mrb[0].mxu0
        %837 = vdwg.mxu0
        %v838 = vmul.f32 %v833, 0.35355338
        %v839 = vsel %vm563, %v838, -inf
        %840 = vmax.xlane.f32.xlu0 %v839
        %v841 = vpop.xlane.xlu0 %840
        %v842 = vsub.f32 %v838, %v841
        %v843 = vmul.f32 %v842, 1.442695
        %v844 = vpow.pop %v843
        %v845 = vsel %vm563, %v844, 0.0
        %846 = vadd.xlane.f32.xlu0 %v845
        %v847 = vpop.xlane.xlu0 %846
        %v848 = vrcp.pop %v847
        %v849 = vmul.f32 %v844, %v848
        %s850 = scalar_lea.vmem %s424, 16 [#allocation11]
        %851 = vst.msk [vmem:[%s850] sm:$0xff] %vm563, %v849
        %v852 = vpack.c.bf16 %v849, %v849
        %853 = vrot.lane.b32.xlu0 %v562, 80
        %v854 = vpop.permute.xlu0 %853
        %v856 = vsel %vm563, %v852, 0
        %v859 = vsel %vm630, %v854, 0
        %861 = vmatprep.subr.bf16.mxu0 0
        %862 = vmatpush1.bf16.msra.mxu0 %v859
        %863 = vmatprep.subr.bf16.mxu0 0
        %864 = vmatpush1.bf16.msra.mxu0 0
        %865 = vmatprep.subr.bf16.mxu0 0
        %866 = vmatpush1.bf16.msra.mxu0 0
        %867 = vmatprep.subr.bf16.mxu0 0
        %868 = vmatpush1.bf16.msra.mxu0 0
        %869 = vmatprep.subr.bf16.mxu0 0
        %870 = vmatpush1.bf16.msra.mxu0 0
        %871 = vmatprep.subr.bf16.mxu0 0
        %872 = vmatpush1.bf16.msra.mxu0 0
        %873 = vmatprep.subr.bf16.mxu0 0
        %874 = vmatpush1.bf16.msra.mxu0 0
        %875 = vmatprep.subr.bf16.mxu0 0
        %876 = vmatpush1.bf16.msra.mxu0 0
        %877 = vmatprep.subr.bf16.mxu0 0
        %878 = vmatpush1.bf16.msra.mxu0 0
        %879 = vmatprep.subr.bf16.mxu0 0
        %880 = vmatpush1.bf16.msra.mxu0 0
        %881 = vmatprep.subr.bf16.mxu0 0
        %882 = vmatpush1.bf16.msra.mxu0 0
        %883 = vmatprep.subr.bf16.mxu0 0
        %884 = vmatpush1.bf16.msra.mxu0 0
        %885 = vmatprep.subr.bf16.mxu0 0
        %886 = vmatpush1.bf16.msra.mxu0 0
        %887 = vmatprep.subr.bf16.mxu0 0
        %888 = vmatpush1.bf16.msra.mxu0 0
        %889 = vmatprep.subr.bf16.mxu0 0
        %890 = vmatpush1.bf16.msra.mxu0 0
        %891 = vmatprep.subr.bf16.mxu0 0
        %892 = vmatpush1.bf16.msra.mxu0 0
        %893 = vmatprep.mubr.bf16.mxu0 0
        %894 = vmatmul.mubr.bf16.gmra.mrb[0].mxu0 %v856
        %v895 = vpop.f32.mrb[0].mxu0
        %v896 = vadd.f32 0.0, %v895
        %v897 = vpop.f32.mrb[0].mxu0
        %v898 = vpop.f32.mrb[0].mxu0
        %v899 = vpop.f32.mrb[0].mxu0
        %900 = vdwg.mxu0
        %901 = vrot.lane.b32.xlu0 %v561, 104
        %v902 = vpop.permute.xlu0 %901
        %903 = vrot.lane.b32.xlu0 %v562, 104
        %v904 = vpop.permute.xlu0 %903
        %v906 = vsel %vm563, %v902, 0
        %v909 = vsel %vm563, %v904, 0
        %911 = vmatprep.subr.bf16.mxu0 0
        %912 = vmatpush1.bf16.xpose.msra.mxu0 %v909
        %913 = vmatprep.subr.bf16.mxu0 0
        %914 = vmatpush1.bf16.xpose.msra.mxu0 0
        %915 = vmatprep.subr.bf16.mxu0 0
        %916 = vmatpush1.bf16.xpose.msra.mxu0 0
        %917 = vmatprep.subr.bf16.mxu0 0
        %918 = vmatpush1.bf16.xpose.msra.mxu0 0
        %919 = vmatprep.subr.bf16.mxu0 0
        %920 = vmatpush1.bf16.xpose.msra.mxu0 0
        %921 = vmatprep.subr.bf16.mxu0 0
        %922 = vmatpush1.bf16.xpose.msra.mxu0 0
        %923 = vmatprep.subr.bf16.mxu0 0
        %924 = vmatpush1.bf16.xpose.msra.mxu0 0
        %925 = vmatprep.subr.bf16.mxu0 0
        %926 = vmatpush1.bf16.xpose.msra.mxu0 0
        %927 = vmatprep.subr.bf16.mxu0 0
        %928 = vmatpush1.bf16.xpose.msra.mxu0 0
        %929 = vmatprep.subr.bf16.mxu0 0
        %930 = vmatpush1.bf16.xpose.msra.mxu0 0
        %931 = vmatprep.subr.bf16.mxu0 0
        %932 = vmatpush1.bf16.xpose.msra.mxu0 0
        %933 = vmatprep.subr.bf16.mxu0 0
        %934 = vmatpush1.bf16.xpose.msra.mxu0 0
        %935 = vmatprep.subr.bf16.mxu0 0
        %936 = vmatpush1.bf16.xpose.msra.mxu0 0
        %937 = vmatprep.subr.bf16.mxu0 0
        %938 = vmatpush1.bf16.xpose.msra.mxu0 0
        %939 = vmatprep.subr.bf16.mxu0 0
        %940 = vmatpush1.bf16.xpose.msra.mxu0 0
        %941 = vmatprep.subr.bf16.mxu0 0
        %942 = vmatpush1.bf16.xpose.msra.mxu0 0
        %943 = vmatprep.mubr.bf16.mxu0 0
        %944 = vmatmul.mubr.bf16.gmra.mrb[0].mxu0 %v906
        %v945 = vpop.f32.mrb[0].mxu0
        %v946 = vadd.f32 0.0, %v945
        %v947 = vpop.f32.mrb[0].mxu0
        %v948 = vpop.f32.mrb[0].mxu0
        %v949 = vpop.f32.mrb[0].mxu0
        %950 = vdwg.mxu0
        %v951 = vmul.f32 %v946, 0.35355338
        %v952 = vsel %vm563, %v951, -inf
        %953 = vmax.xlane.f32.xlu0 %v952
        %v954 = vpop.xlane.xlu0 %953
        %v955 = vsub.f32 %v951, %v954
        %v956 = vmul.f32 %v955, 1.442695
        %v957 = vpow.pop %v956
        %v958 = vsel %vm563, %v957, 0.0
        %959 = vadd.xlane.f32.xlu0 %v958
        %v960 = vpop.xlane.xlu0 %959
        %v961 = vrcp.pop %v960
        %v962 = vmul.f32 %v957, %v961
        %s963 = scalar_lea.vmem %s424, 24 [#allocation11]
        %964 = vst.msk [vmem:[%s963] sm:$0xff] %vm563, %v962
        %v965 = vpack.c.bf16 %v962, %v962
        %966 = vrot.lane.b32.xlu0 %v562, 72
        %v967 = vpop.permute.xlu0 %966
        %v969 = vsel %vm563, %v965, 0
        %v972 = vsel %vm630, %v967, 0
        %974 = vmatprep.subr.bf16.mxu0 0
        %975 = vmatpush1.bf16.msra.mxu0 %v972
        %976 = vmatprep.subr.bf16.mxu0 0
        %977 = vmatpush1.bf16.msra.mxu0 0
        %978 = vmatprep.subr.bf16.mxu0 0
        %979 = vmatpush1.bf16.msra.mxu0 0
        %980 = vmatprep.subr.bf16.mxu0 0
        %981 = vmatpush1.bf16.msra.mxu0 0
        %982 = vmatprep.subr.bf16.mxu0 0
        %983 = vmatpush1.bf16.msra.mxu0 0
        %984 = vmatprep.subr.bf16.mxu0 0
        %985 = vmatpush1.bf16.msra.mxu0 0
        %986 = vmatprep.subr.bf16.mxu0 0
        %987 = vmatpush1.bf16.msra.mxu0 0
        %988 = vmatprep.subr.bf16.mxu0 0
        %989 = vmatpush1.bf16.msra.mxu0 0
        %990 = vmatprep.subr.bf16.mxu0 0
        %991 = vmatpush1.bf16.msra.mxu0 0
        %992 = vmatprep.subr.bf16.mxu0 0
        %993 = vmatpush1.bf16.msra.mxu0 0
        %994 = vmatprep.subr.bf16.mxu0 0
        %995 = vmatpush1.bf16.msra.mxu0 0
        %996 = vmatprep.subr.bf16.mxu0 0
        %997 = vmatpush1.bf16.msra.mxu0 0
        %998 = vmatprep.subr.bf16.mxu0 0
        %999 = vmatpush1.bf16.msra.mxu0 0
        %1000 = vmatprep.subr.bf16.mxu0 0
        %1001 = vmatpush1.bf16.msra.mxu0 0
        %1002 = vmatprep.subr.bf16.mxu0 0
        %1003 = vmatpush1.bf16.msra.mxu0 0
        %1004 = vmatprep.subr.bf16.mxu0 0
        %1005 = vmatpush1.bf16.msra.mxu0 0
        %1006 = vmatprep.mubr.bf16.mxu0 0
        %1007 = vmatmul.mubr.bf16.gmra.mrb[0].mxu0 %v969
        %v1008 = vpop.f32.mrb[0].mxu0
        %v1009 = vadd.f32 0.0, %v1008
        %v1010 = vpop.f32.mrb[0].mxu0
        %v1011 = vpop.f32.mrb[0].mxu0
        %v1012 = vpop.f32.mrb[0].mxu0
        %1013 = vdwg.mxu0
        %1015 = vrot.lane.b32.xlu0 %v783, 8
        %v1016 = vpop.permute.xlu0 %1015
        %1019 = vrot.lane.b32.xlu0 %v896, 16
        %v1020 = vpop.permute.xlu0 %1019
        %1023 = vrot.lane.b32.xlu0 %v1009, 24
        %v1024 = vpop.permute.xlu0 %1023
        %v1026 = vsel %vm563, %v669, %v1016
        %vm1027 = vcmask 130048
        %v1028 = vsel %vm1027, %v1026, %v1020
        %vm1029 = vcmask 195584
        %v1030 = vsel %vm1029, %v1028, %v1024
        %v1031 = vpack.c.bf16 %v1030, %v1030
        %v1032 = vld [vmem:[%s6] sm:$0xf]
        %v1033 = vld [vmem:[%s6 + $0x4] sm:$0xf]
        %v1034 = vld [vmem:[%s6 + $0x8] sm:$0xf]
        %v1035 = vld [vmem:[%s6 + $0xc] sm:$0xf]
        %v1036 = vld [vmem:[%s7] sm:$0x1]
        %v1038 = vlaneseq
        %v1039 = vshrl.u32 %v1038, 7
        %v1040 = vsub.s32 0, %v1039
        %v1041 = vrot.slane %v1036, %v1040
        %v1047 = vunpack.c.l.b16 %v1032
        %v1048 = vunpack.c.l.b16 %v1033
        %v1049 = vunpack.c.l.b16 %v1034
        %v1050 = vunpack.c.l.b16 %v1035
        %v1051 = vpack.c.b16 %v1048, %v1047
        %v1052 = vpack.c.b16 %v1050, %v1049
        %v1056 = vsel %vm451, %v1031, 0
        %1058 = vmatprep.subr.bf16.mxu0 0
        %1059 = vmatpush1.bf16.msra.mxu0 %v1051
        %1060 = vmatprep.subr.bf16.mxu0 0
        %1061 = vmatpush1.bf16.msra.mxu0 %v1052
        %1062 = vmatprep.subr.bf16.mxu0 0
        %1063 = vmatpush1.bf16.msra.mxu0 0
        %1064 = vmatprep.subr.bf16.mxu0 0
        %1065 = vmatpush1.bf16.msra.mxu0 0
        %1066 = vmatprep.subr.bf16.mxu0 0
        %1067 = vmatpush1.bf16.msra.mxu0 0
        %1068 = vmatprep.subr.bf16.mxu0 0
        %1069 = vmatpush1.bf16.msra.mxu0 0
        %1070 = vmatprep.subr.bf16.mxu0 0
        %1071 = vmatpush1.bf16.msra.mxu0 0
        %1072 = vmatprep.subr.bf16.mxu0 0
        %1073 = vmatpush1.bf16.msra.mxu0 0
        %1074 = vmatprep.subr.bf16.mxu0 0
        %1075 = vmatpush1.bf16.msra.mxu0 0
        %1076 = vmatprep.subr.bf16.mxu0 0
        %1077 = vmatpush1.bf16.msra.mxu0 0
        %1078 = vmatprep.subr.bf16.mxu0 0
        %1079 = vmatpush1.bf16.msra.mxu0 0
        %1080 = vmatprep.subr.bf16.mxu0 0
        %1081 = vmatpush1.bf16.msra.mxu0 0
        %1082 = vmatprep.subr.bf16.mxu0 0
        %1083 = vmatpush1.bf16.msra.mxu0 0
        %1084 = vmatprep.subr.bf16.mxu0 0
        %1085 = vmatpush1.bf16.msra.mxu0 0
        %1086 = vmatprep.subr.bf16.mxu0 0
        %1087 = vmatpush1.bf16.msra.mxu0 0
        %1088 = vmatprep.subr.bf16.mxu0 0
        %1089 = vmatpush1.bf16.msra.mxu0 0
        %1090 = vmatprep.mubr.bf16.mxu0 0
        %1091 = vmatmul.mubr.bf16.gmra.mrb[0].mxu0 %v1056
        %v1092 = vpop.f32.mrb[0].mxu0
        %v1093 = vadd.f32 %v1041, %v1092
        %v1094 = vpop.f32.mrb[0].mxu0
        %v1095 = vpop.f32.mrb[0].mxu0
        %v1096 = vpop.f32.mrb[0].mxu0
        %1097 = vdwg.mxu0
        %1098 = vst.msk [vmem:[%s417] sm:$0xff] %vm451, %v1093
        %s1099 = sand.u32 %s220, 1
        %s1100 = scalar_lea.sflag [#allocation4], %s1099
        %s1101 = sand.u32 %s220, 1
        %s1102 = smul.addr %s1101, 8
        %s1103 = scalar_lea.vmem [#allocation10], %s1102
        %s1104 = sand.u32 %s246, 1
        %s1105 = scalar_lea.sflag [#allocation12], %s1104
        %s1106 = sand.u32 %s246, 1
        %s1107 = smul.addr %s1106, 32
        %s1108 = scalar_lea.vmem [#allocation11], %s1107
        // Predicated region
        $region69: #{tpu_custom_call.1} parent=51 // pred_check
          %p1109 = pneg %p230
        $region70: #{tpu_custom_call.1} parent=51 // pred_check_branch
          %1111 = sbr.rel (%p1109) target = $region72
        $region71: #{tpu_custom_call.1} parent=51 // pred_region
          %s1113 = ssub.s32 128, 128
          %1114 = vsyncadd %s1100, %s1113
          %s1115 = smul.addr %s34, 128
          %s1116 = scalar_lea.hbm %s8, %s1115
          %s1118 = sshll.u32 %s1103, 4
          %s1119 = int_to_ptr.vmem [resolvable:$true] %s1118
          %1121 = dma.vmem_to_hbm [thread:$0]  %s1119, 128, %s1116, %s1100
        $region72: #{tpu_custom_call.1} parent=51 // pred_fallthru
          _
        // Predicated region
        $region73: #{tpu_custom_call.1} parent=51 // pred_check
          %p1122 = pneg %p256
        $region74: #{tpu_custom_call.1} parent=51 // pred_check_branch
          %1124 = sbr.rel (%p1122) target = $region76
        $region75: #{tpu_custom_call.1} parent=51 // pred_region
          %s1126 = ssub.s32 512, 512
          %1127 = vsyncadd %s1105, %s1126
          %s1128 = smul.addr %s34, 4
          %s1129 = smul.addr %s1128, 128
          %s1130 = scalar_lea.hbm %s9, %s1129
          %s1131 = sshll.u32 %s1108, 4
          %s1132 = int_to_ptr.vmem [resolvable:$true] %s1131
          %1137 = dma.vmem_to_hbm [thread:$0]  %s1132, 512, %s1130, %s1105, 128, 128, 8
        $region76: #{tpu_custom_call.1} parent=51 // pred_fallthru
          _
      $region52: #{tpu_custom_call.1} parent=5 // pred_fallthru
        _
      %p1138 = scmp.le.s32.totalorder 2, %s29
      // Predicated region
      $region77: #{tpu_custom_call.1} parent=5 // pred_check
        %p1139 = pneg %p1138
      $region78: #{tpu_custom_call.1} parent=5 // pred_check_branch
        %1141 = sbr.rel (%p1139) target = $region80
      $region79: #{tpu_custom_call.1} parent=5 // pred_region
        %s1142 = ssub.s32 %s29, 2
        // Predicated region
        $region81: #{tpu_custom_call.1} parent=79 // pred_check
          %p1143 = pneg %p236
        $region82: #{tpu_custom_call.1} parent=79 // pred_check_branch
          %1145 = sbr.rel (%p1143) target = $region84
        $region83: #{tpu_custom_call.1} parent=79 // pred_region
          %s1146 = sand.u32 %s221, 1
          %s1147 = scalar_lea.sflag [#allocation4], %s1146
          %s1148 = sand.u32 %s221, 1
          %s1149 = smul.addr %s1148, 8
          %s1150 = scalar_lea.vmem [#allocation10], %s1149
          %1151 = dma.done %s1147, 128
        $region84: #{tpu_custom_call.1} parent=79 // pred_fallthru
          _
        // Predicated region
        $region85: #{tpu_custom_call.1} parent=79 // pred_check
          %p1152 = pneg %p262
        $region86: #{tpu_custom_call.1} parent=79 // pred_check_branch
          %1154 = sbr.rel (%p1152) target = $region88
        $region87: #{tpu_custom_call.1} parent=79 // pred_region
          %s1155 = sand.u32 %s247, 1
          %s1156 = scalar_lea.sflag [#allocation12], %s1155
          %s1157 = sand.u32 %s247, 1
          %s1158 = smul.addr %s1157, 32
          %s1159 = scalar_lea.vmem [#allocation11], %s1158
          %1160 = dma.done %s1156, 512
        $region88: #{tpu_custom_call.1} parent=79 // pred_fallthru
          _
      $region80: #{tpu_custom_call.1} parent=5 // pred_fallthru
        _
    $region6: #{tpu_custom_call.1} parent=1 // loop_footer
      %s33 = sadd.s32 1, %s29
    $region7: #{tpu_custom_call.1} parent=1 // loop_footer_branch
      %28 = sbr.rel target = $region3
    $region8: #{tpu_custom_call.1} parent=1 // loop_exit
      _
    %1161 = vsyncpa [#allocation3], 1
    %s1162 = scalar_lea.sflag [#allocation3], 1
    %1163 = vsyncpa %s1162, 1
    %1164 = vsyncpa [#allocation6], 1
    %s1165 = scalar_lea.sflag [#allocation6], 1
    %1166 = vsyncpa %s1165, 1
    %1167 = vsyncpa [#allocation9], 1
    %1168 = vsyncpa [#allocation4], 1
    %s1169 = scalar_lea.sflag [#allocation4], 1
    %1170 = vsyncpa %s1169, 1
    %1171 = vsyncpa [#allocation12], 1
    %s1172 = scalar_lea.sflag [#allocation12], 1
    %1173 = vsyncpa %s1172, 1

</llo_original>
